<compile_context>
chip_gen: v6e
topology: v6e:2x2x1
jax: 0.10.0
libtpu: 0.0.40
codegen_flags: <defaults>
</compile_context>

<pallas_src>
import functools

import jax
import jax.numpy as jnp
from jax import lax
from jax.experimental import pallas as pl
from jax.experimental.pallas import tpu as pltpu

INPUT_SIZE = 8
HIDDEN = 64
NUM_GATES = 4  # PyTorch gate order: i, f, g, o ; kernel gate order: i, f, o, g


def _round_up(x, m):
    return (x + m - 1) // m * m


def _lstm_kernel(x_ref,       # (T, Bt, IN)   VMEM
                 wih0_ref,    # (IN, 4H)      VMEM  (layer-0 input weights, kernel gate order)
                 whh0_ref,    # (H, 4H)       VMEM  (layer-0 recurrent weights)
                 b0_ref,      # (1, 4H)       VMEM  (b_ih + b_hh, layer 0)
                 w1_ref,      # (2H, 4H)      VMEM  ([W_ih_l1; W_hh_l1] fused)
                 b1_ref,      # (1, 4H)       VMEM  (b_ih + b_hh, layer 1)
                 wout_ref,    # (1, H)        VMEM  (Linear weight row)
                 bout_ref,    # (1, 1)        VMEM
                 out_ref,     # (Bt, 1)       VMEM
                 gx_ref,      # (T, Bt, 4H)   VMEM scratch
                 *, compute_dtype):
    T, Bt, IN = x_ref.shape
    H = HIDDEN
    G = NUM_GATES * H

    # ---- Hoisted layer-0 input projection: ONE matmul for all timesteps ----
    x_all = x_ref[...].reshape(T * Bt, IN)
    gx = (jnp.dot(x_all.astype(compute_dtype),
                  wih0_ref[...].astype(compute_dtype),
                  preferred_element_type=jnp.float32)
          + b0_ref[...])                       # bias folded in once
    gx_ref[...] = gx.reshape(T, Bt, G)

    # Hoist the layer-1 bias broadcast above the unrolled loop (JAX does not
    # CSE broadcast_in_dim).
    b1_full = jnp.broadcast_to(b1_ref[...], (Bt, G))

    whh0 = whh0_ref[...].astype(compute_dtype)
    w1 = w1_ref[...].astype(compute_dtype)

    def activate(g):
        # Kernel gate order (i, f, o, g): one contiguous sigmoid slab + 1 tanh.
        s = jax.nn.sigmoid(g[:, :3 * H])
        i = s[:, 0 * H:1 * H]
        f = s[:, 1 * H:2 * H]
        o = s[:, 2 * H:3 * H]
        gg = jnp.tanh(g[:, 3 * H:])
        return i, f, o, gg

    def step(t, carry):
        h0, c0, h1, c1 = carry
        # Layer 0: precomputed input projection + one recurrent matmul (K=64).
        g0 = gx_ref[t] + jnp.dot(h0.astype(compute_dtype), whh0,
                                 preferred_element_type=jnp.float32)
        i0, f0, o0, gg0 = activate(g0)
        c0 = f0 * c0 + i0 * gg0
        h0 = o0 * jnp.tanh(c0)
        # Layer 1: fused input+recurrent matmul (K=128 fills the lane width).
        hcat = jnp.concatenate([h0, h1], axis=-1)
        g1 = jnp.dot(hcat.astype(compute_dtype), w1,
                     preferred_element_type=jnp.float32) + b1_full
        i1, f1, o1, gg1 = activate(g1)
        c1 = f1 * c1 + i1 * gg1
        h1 = o1 * jnp.tanh(c1)
        return (h0, c0, h1, c1)

    zeros = jnp.zeros((Bt, H), jnp.float32)
    h0, c0, h1, c1 = lax.fori_loop(0, T, step, (zeros, zeros, zeros, zeros),
                                   unroll=True)

    # Final Linear(64 -> 1): VPU multiply + lane reduction (no 1-column MXU op).
    out_ref[...] = (jnp.sum(h1 * wout_ref[...], axis=-1, keepdims=True)
                    + bout_ref[...])


# Column permutation from PyTorch gate order (i, f, g, o) to kernel order (i, f, o, g).
_GATE_PERM = jnp.concatenate([
    jnp.arange(0 * HIDDEN, 1 * HIDDEN),   # i
    jnp.arange(1 * HIDDEN, 2 * HIDDEN),   # f
    jnp.arange(3 * HIDDEN, 4 * HIDDEN),   # o
    jnp.arange(2 * HIDDEN, 3 * HIDDEN),   # g
])


def prepare_params(p):
    """PyTorch-layout params -> kernel layout (transposed, gate-permuted, fused)."""
    perm = _GATE_PERM
    wih0 = p["w_ih_l0"].T[:, perm]                                # (IN, 4H)
    whh0 = p["w_hh_l0"].T[:, perm]                                # (H, 4H)
    b0 = (p["b_ih_l0"] + p["b_hh_l0"])[perm][None, :]             # (1, 4H)
    w1 = jnp.concatenate([p["w_ih_l1"].T, p["w_hh_l1"].T], axis=0)[:, perm]  # (2H, 4H)
    b1 = (p["b_ih_l1"] + p["b_hh_l1"])[perm][None, :]             # (1, 4H)
    wout = p["w_out"]                                             # (1, H)
    bout = p["b_out"][None, :]                                    # (1, 1)
    return dict(wih0=wih0, whh0=whh0, b0=b0, w1=w1, b1=b1, wout=wout, bout=bout)


def rnn_forward(x, params, *, tile_b=128, compute_dtype=jnp.float32):
    """x: (B, T, INPUT_SIZE) float32 -> (B, 1) float32."""
    kp = prepare_params(params)
    B, T, IN = x.shape
    assert IN == INPUT_SIZE
    G = NUM_GATES * HIDDEN

    # Pad batch to full sublanes / a whole batch tile; grid over batch tiles
    # ("parallel") uses both TensorCores on v7x and is harmless on v5e/v6e.
    tb = min(tile_b, _round_up(B, 8))
    Bp = _round_up(B, tb)

    x_tbi = jnp.transpose(x, (1, 0, 2))            # (T, B, IN)
    if Bp != B:
        x_tbi = jnp.pad(x_tbi, ((0, 0), (0, Bp - B), (0, 0)))

    rep = lambda b: (0, 0)                         # weights replicated per tile
    kernel = pl.pallas_call(
        functools.partial(_lstm_kernel, compute_dtype=compute_dtype),
        out_shape=jax.ShapeDtypeStruct((Bp, 1), jnp.float32),
        grid_spec=pltpu.PrefetchScalarGridSpec(
            num_scalar_prefetch=0,
            grid=(Bp // tb,),
            in_specs=[
                pl.BlockSpec((T, tb, INPUT_SIZE), lambda b: (0, b, 0)),
                pl.BlockSpec((INPUT_SIZE, G), rep),
                pl.BlockSpec((HIDDEN, G), rep),
                pl.BlockSpec((1, G), rep),
                pl.BlockSpec((2 * HIDDEN, G), rep),
                pl.BlockSpec((1, G), rep),
                pl.BlockSpec((1, HIDDEN), rep),
                pl.BlockSpec((1, 1), rep),
            ],
            out_specs=pl.BlockSpec((tb, 1), lambda b: (b, 0)),
            scratch_shapes=[pltpu.VMEM((T, tb, G), jnp.float32)],
        ),
        compiler_params=pltpu.CompilerParams(
            dimension_semantics=("parallel",)),
    )
    out = kernel(x_tbi, kp["wih0"], kp["whh0"], kp["b0"],
                 kp["w1"], kp["b1"], kp["wout"], kp["bout"])
    return out[:B]


def init_params(key):
    """Deterministic init with PyTorch nn.LSTM / nn.Linear shapes and gate order."""
    ks = jax.random.split(key, 10)
    bound = 1.0 / jnp.sqrt(jnp.float32(HIDDEN))

    def u(k, shape):
        return jax.random.uniform(k, shape, jnp.float32, -bound, bound)

    G = NUM_GATES * HIDDEN
    return dict(
        w_ih_l0=u(ks[0], (G, INPUT_SIZE)),
        w_hh_l0=u(ks[1], (G, HIDDEN)),
        b_ih_l0=u(ks[2], (G,)),
        b_hh_l0=u(ks[3], (G,)),
        w_ih_l1=u(ks[4], (G, HIDDEN)),
        w_hh_l1=u(ks[5], (G, HIDDEN)),
        b_ih_l1=u(ks[6], (G,)),
        b_hh_l1=u(ks[7], (G,)),
        w_out=u(ks[8], (1, HIDDEN)),
        b_out=u(ks[9], (1,)),
    )


def _reference(x, params):
    """Pure-JAX reference in PyTorch conventions (gate order i, f, g, o)."""
    H = HIDDEN

    def cell(x_t, h, c, w_ih, w_hh, b_ih, b_hh):
        g = x_t @ w_ih.T + h @ w_hh.T + b_ih + b_hh
        i = jax.nn.sigmoid(g[:, 0 * H:1 * H])
        f = jax.nn.sigmoid(g[:, 1 * H:2 * H])
        gg = jnp.tanh(g[:, 2 * H:3 * H])
        o = jax.nn.sigmoid(g[:, 3 * H:4 * H])
        c = f * c + i * gg
        return o * jnp.tanh(c), c

    B, T, _ = x.shape
    h0 = c0 = h1 = c1 = jnp.zeros((B, H), jnp.float32)
    for t in range(T):
        h0, c0 = cell(x[:, t], h0, c0, params["w_ih_l0"], params["w_hh_l0"],
                      params["b_ih_l0"], params["b_hh_l0"])
        h1, c1 = cell(h0, h1, c1, params["w_ih_l1"], params["w_hh_l1"],
                      params["b_ih_l1"], params["b_hh_l1"])
    return h1 @ params["w_out"].T + params["b_out"]


if __name__ == "__main__":
    key = jax.random.PRNGKey(0)
    k_x, k_p = jax.random.split(key)

    B, T = 2, 8
    x = jax.random.normal(k_x, (B, T, INPUT_SIZE), jnp.float32)
    params = init_params(k_p)

    out = rnn_forward(x, params)
    out = jax.block_until_ready(out)

    ref = _reference(x, params)
    assert out.shape == (B, 1), out.shape
    assert jnp.allclose(out, ref, atol=1e-4, rtol=1e-4), (out, ref)

    print("KERNEL_OK")
</pallas_src>

<mosaic_0001>
module attributes {stable_mosaic.version = 11 : i64} {
  func.func @_lstm_kernel(%arg0: i32, %arg1: memref<8x8x8xf32, #tpu.memory_space<vmem>>, %arg2: memref<8x256xf32, #tpu.memory_space<vmem>>, %arg3: memref<64x256xf32, #tpu.memory_space<vmem>>, %arg4: memref<1x256xf32, #tpu.memory_space<vmem>>, %arg5: memref<128x256xf32, #tpu.memory_space<vmem>>, %arg6: memref<1x256xf32, #tpu.memory_space<vmem>>, %arg7: memref<1x64xf32, #tpu.memory_space<vmem>>, %arg8: memref<1x1xf32, #tpu.memory_space<vmem>>, %arg9: memref<8x1xf32, #tpu.memory_space<vmem>>, %arg10: memref<8x8x256xf32, #tpu.memory_space<vmem>>) attributes {dimension_semantics = [#tpu.dimension_semantics<parallel>], iteration_bounds = array<i64: 1>, scalar_prefetch = 0 : i64, scratch_operands = 1 : i64, tpu.core_type = #tpu.core_type<tc>, window_params = [{transform_indices = @transform_0, window_bounds = array<i64: 8, 8, 8>}, {pipeline_mode = #tpu.pipeline_mode<synchronous>, transform_indices = @transform_1, window_bounds = array<i64: 8, 256>}, {pipeline_mode = #tpu.pipeline_mode<synchronous>, transform_indices = @transform_2, window_bounds = array<i64: 64, 256>}, {pipeline_mode = #tpu.pipeline_mode<synchronous>, transform_indices = @transform_3, window_bounds = array<i64: 1, 256>}, {pipeline_mode = #tpu.pipeline_mode<synchronous>, transform_indices = @transform_4, window_bounds = array<i64: 128, 256>}, {pipeline_mode = #tpu.pipeline_mode<synchronous>, transform_indices = @transform_5, window_bounds = array<i64: 1, 256>}, {pipeline_mode = #tpu.pipeline_mode<synchronous>, transform_indices = @transform_6, window_bounds = array<i64: 1, 64>}, {pipeline_mode = #tpu.pipeline_mode<synchronous>, transform_indices = @transform_7, window_bounds = array<i64: 1, 1>}, {transform_indices = @transform_8, window_bounds = array<i64: 8, 1>}]} {
    %c0 = arith.constant 0 : index
    %c0_0 = arith.constant 0 : index
    %c0_1 = arith.constant 0 : index
    %0 = vector.load %arg1[%c0, %c0_0, %c0_1] : memref<8x8x8xf32, #tpu.memory_space<vmem>>, vector<8x8x8xf32>
    %1 = vector.shape_cast %0 : vector<8x8x8xf32> to vector<64x8xf32>
    %c0_2 = arith.constant 0 : index
    %c0_3 = arith.constant 0 : index
    %2 = vector.load %arg2[%c0_2, %c0_3] : memref<8x256xf32, #tpu.memory_space<vmem>>, vector<8x256xf32>
    %cst = arith.constant dense<0.000000e+00> : vector<64x256xf32>
    %3 = tpu.matmul %1, %2, %cst {dimension_numbers = #tpu.dot_dimension_numbers<[1], [0], [0], [1], [0, 0, 1, 1], [], []>} : vector<64x8xf32>, vector<8x256xf32>, vector<64x256xf32> -> vector<64x256xf32>
    %c0_4 = arith.constant 0 : index
    %c0_5 = arith.constant 0 : index
    %4 = vector.load %arg4[%c0_4, %c0_5] : memref<1x256xf32, #tpu.memory_space<vmem>>, vector<1x256xf32>
    %5 = vector.broadcast %4 : vector<1x256xf32> to vector<64x256xf32>
    %6 = arith.addf %3, %5 : vector<64x256xf32>
    %7 = vector.shape_cast %6 : vector<64x256xf32> to vector<8x8x256xf32>
    %c0_6 = arith.constant 0 : index
    %c0_7 = arith.constant 0 : index
    %c0_8 = arith.constant 0 : index
    %8 = vector.load %arg10[%c0_6, %c0_7, %c0_8] : memref<8x8x256xf32, #tpu.memory_space<vmem>>, vector<8x8x256xf32>
    tpu.vector_store %arg10[%c0_6, %c0_7, %c0_8], %7 {strides = array<i32>} : memref<8x8x256xf32, #tpu.memory_space<vmem>>, vector<8x8x256xf32>,
    %c0_9 = arith.constant 0 : index
    %c0_10 = arith.constant 0 : index
    %9 = vector.load %arg6[%c0_9, %c0_10] : memref<1x256xf32, #tpu.memory_space<vmem>>, vector<1x256xf32>
    %10 = vector.shape_cast %9 : vector<1x256xf32> to vector<1x256xf32>
    %11 = vector.broadcast %10 : vector<1x256xf32> to vector<8x256xf32>
    %c0_11 = arith.constant 0 : index
    %c0_12 = arith.constant 0 : index
    %12 = vector.load %arg3[%c0_11, %c0_12] : memref<64x256xf32, #tpu.memory_space<vmem>>, vector<64x256xf32>
    %c0_13 = arith.constant 0 : index
    %c0_14 = arith.constant 0 : index
    %13 = vector.load %arg5[%c0_13, %c0_14] : memref<128x256xf32, #tpu.memory_space<vmem>>, vector<128x256xf32>
    %cst_15 = arith.constant 0.000000e+00 : f32
    %14 = vector.broadcast %cst_15 : f32 to vector<8x64xf32>
    %c0_i32 = arith.constant 0 : i32
    %15 = arith.index_cast %c0_i32 : i32 to index
    %c0_16 = arith.constant 0 : index
    %c0_17 = arith.constant 0 : index
    %16 = vector.load %arg10[%15, %c0_16, %c0_17] : memref<8x8x256xf32, #tpu.memory_space<vmem>>, vector<1x8x256xf32>
    %17 = vector.shape_cast %16 : vector<1x8x256xf32> to vector<8x256xf32>
    %cst_18 = arith.constant dense<0.000000e+00> : vector<8x256xf32>
    %18 = tpu.matmul %14, %12, %cst_18 {dimension_numbers = #tpu.dot_dimension_numbers<[1], [0], [0], [1], [0, 0, 1, 1], [], []>} : vector<8x64xf32>, vector<64x256xf32>, vector<8x256xf32> -> vector<8x256xf32>
    %19 = arith.addf %17, %18 : vector<8x256xf32>
    %20 = vector.extract_strided_slice %19 {offsets = [0, 0], sizes = [8, 192], strides = [1, 1]} : vector<8x256xf32> to vector<8x192xf32>
    %21 = arith.negf %20 : vector<8x192xf32>
    %22 = math.exp %21 : vector<8x192xf32>
    %cst_19 = arith.constant 1.000000e+00 : f32
    %23 = vector.broadcast %cst_19 : f32 to vector<8x192xf32>
    %24 = arith.addf %23, %22 : vector<8x192xf32>
    %25 = arith.divf %23, %24 : vector<8x192xf32>
    %26 = vector.extract_strided_slice %25 {offsets = [0, 0], sizes = [8, 64], strides = [1, 1]} : vector<8x192xf32> to vector<8x64xf32>
    %27 = vector.extract_strided_slice %25 {offsets = [0, 64], sizes = [8, 64], strides = [1, 1]} : vector<8x192xf32> to vector<8x64xf32>
    %28 = vector.extract_strided_slice %25 {offsets = [0, 128], sizes = [8, 64], strides = [1, 1]} : vector<8x192xf32> to vector<8x64xf32>
    %29 = vector.extract_strided_slice %19 {offsets = [0, 192], sizes = [8, 64], strides = [1, 1]} : vector<8x256xf32> to vector<8x64xf32>
    %30 = math.tanh %29 : vector<8x64xf32>
    %31 = arith.mulf %27, %14 : vector<8x64xf32>
    %32 = arith.mulf %26, %30 : vector<8x64xf32>
    %33 = arith.addf %31, %32 : vector<8x64xf32>
    %34 = math.tanh %33 : vector<8x64xf32>
    %35 = arith.mulf %28, %34 : vector<8x64xf32>
    %36 = tpu.concatenate %35, %14 in 1 : vector<8x64xf32>, vector<8x64xf32> -> vector<8x128xf32>
    %cst_20 = arith.constant dense<0.000000e+00> : vector<8x256xf32>
    %37 = tpu.matmul %36, %13, %cst_20 {dimension_numbers = #tpu.dot_dimension_numbers<[1], [0], [0], [1], [0, 0, 1, 1], [], []>} : vector<8x128xf32>, vector<128x256xf32>, vector<8x256xf32> -> vector<8x256xf32>
    %38 = arith.addf %37, %11 : vector<8x256xf32>
    %39 = vector.extract_strided_slice %38 {offsets = [0, 0], sizes = [8, 192], strides = [1, 1]} : vector<8x256xf32> to vector<8x192xf32>
    %40 = arith.negf %39 : vector<8x192xf32>
    %41 = math.exp %40 : vector<8x192xf32>
    %cst_21 = arith.constant 1.000000e+00 : f32
    %42 = vector.broadcast %cst_21 : f32 to vector<8x192xf32>
    %43 = arith.addf %42, %41 : vector<8x192xf32>
    %44 = arith.divf %42, %43 : vector<8x192xf32>
    %45 = vector.extract_strided_slice %44 {offsets = [0, 0], sizes = [8, 64], strides = [1, 1]} : vector<8x192xf32> to vector<8x64xf32>
    %46 = vector.extract_strided_slice %44 {offsets = [0, 64], sizes = [8, 64], strides = [1, 1]} : vector<8x192xf32> to vector<8x64xf32>
    %47 = vector.extract_strided_slice %44 {offsets = [0, 128], sizes = [8, 64], strides = [1, 1]} : vector<8x192xf32> to vector<8x64xf32>
    %48 = vector.extract_strided_slice %38 {offsets = [0, 192], sizes = [8, 64], strides = [1, 1]} : vector<8x256xf32> to vector<8x64xf32>
    %49 = math.tanh %48 : vector<8x64xf32>
    %50 = arith.mulf %46, %14 : vector<8x64xf32>
    %51 = arith.mulf %45, %49 : vector<8x64xf32>
    %52 = arith.addf %50, %51 : vector<8x64xf32>
    %53 = math.tanh %52 : vector<8x64xf32>
    %54 = arith.mulf %47, %53 : vector<8x64xf32>
    %c1_i32 = arith.constant 1 : i32
    %55 = arith.index_cast %c1_i32 : i32 to index
    %c0_22 = arith.constant 0 : index
    %c0_23 = arith.constant 0 : index
    %56 = vector.load %arg10[%55, %c0_22, %c0_23] : memref<8x8x256xf32, #tpu.memory_space<vmem>>, vector<1x8x256xf32>
    %57 = vector.shape_cast %56 : vector<1x8x256xf32> to vector<8x256xf32>
    %cst_24 = arith.constant dense<0.000000e+00> : vector<8x256xf32>
    %58 = tpu.matmul %35, %12, %cst_24 {dimension_numbers = #tpu.dot_dimension_numbers<[1], [0], [0], [1], [0, 0, 1, 1], [], []>} : vector<8x64xf32>, vector<64x256xf32>, vector<8x256xf32> -> vector<8x256xf32>
    %59 = arith.addf %57, %58 : vector<8x256xf32>
    %60 = vector.extract_strided_slice %59 {offsets = [0, 0], sizes = [8, 192], strides = [1, 1]} : vector<8x256xf32> to vector<8x192xf32>
    %61 = arith.negf %60 : vector<8x192xf32>
    %62 = math.exp %61 : vector<8x192xf32>
    %cst_25 = arith.constant 1.000000e+00 : f32
    %63 = vector.broadcast %cst_25 : f32 to vector<8x192xf32>
    %64 = arith.addf %63, %62 : vector<8x192xf32>
    %65 = arith.divf %63, %64 : vector<8x192xf32>
    %66 = vector.extract_strided_slice %65 {offsets = [0, 0], sizes = [8, 64], strides = [1, 1]} : vector<8x192xf32> to vector<8x64xf32>
    %67 = vector.extract_strided_slice %65 {offsets = [0, 64], sizes = [8, 64], strides = [1, 1]} : vector<8x192xf32> to vector<8x64xf32>
    %68 = vector.extract_strided_slice %65 {offsets = [0, 128], sizes = [8, 64], strides = [1, 1]} : vector<8x192xf32> to vector<8x64xf32>
    %69 = vector.extract_strided_slice %59 {offsets = [0, 192], sizes = [8, 64], strides = [1, 1]} : vector<8x256xf32> to vector<8x64xf32>
    %70 = math.tanh %69 : vector<8x64xf32>
    %71 = arith.mulf %67, %33 : vector<8x64xf32>
    %72 = arith.mulf %66, %70 : vector<8x64xf32>
    %73 = arith.addf %71, %72 : vector<8x64xf32>
    %74 = math.tanh %73 : vector<8x64xf32>
    %75 = arith.mulf %68, %74 : vector<8x64xf32>
    %76 = tpu.concatenate %75, %54 in 1 : vector<8x64xf32>, vector<8x64xf32> -> vector<8x128xf32>
    %cst_26 = arith.constant dense<0.000000e+00> : vector<8x256xf32>
    %77 = tpu.matmul %76, %13, %cst_26 {dimension_numbers = #tpu.dot_dimension_numbers<[1], [0], [0], [1], [0, 0, 1, 1], [], []>} : vector<8x128xf32>, vector<128x256xf32>, vector<8x256xf32> -> vector<8x256xf32>
    %78 = arith.addf %77, %11 : vector<8x256xf32>
    %79 = vector.extract_strided_slice %78 {offsets = [0, 0], sizes = [8, 192], strides = [1, 1]} : vector<8x256xf32> to vector<8x192xf32>
    %80 = arith.negf %79 : vector<8x192xf32>
    %81 = math.exp %80 : vector<8x192xf32>
    %cst_27 = arith.constant 1.000000e+00 : f32
    %82 = vector.broadcast %cst_27 : f32 to vector<8x192xf32>
    %83 = arith.addf %82, %81 : vector<8x192xf32>
    %84 = arith.divf %82, %83 : vector<8x192xf32>
    %85 = vector.extract_strided_slice %84 {offsets = [0, 0], sizes = [8, 64], strides = [1, 1]} : vector<8x192xf32> to vector<8x64xf32>
    %86 = vector.extract_strided_slice %84 {offsets = [0, 64], sizes = [8, 64], strides = [1, 1]} : vector<8x192xf32> to vector<8x64xf32>
    %87 = vector.extract_strided_slice %84 {offsets = [0, 128], sizes = [8, 64], strides = [1, 1]} : vector<8x192xf32> to vector<8x64xf32>
    %88 = vector.extract_strided_slice %78 {offsets = [0, 192], sizes = [8, 64], strides = [1, 1]} : vector<8x256xf32> to vector<8x64xf32>
    %89 = math.tanh %88 : vector<8x64xf32>
    %90 = arith.mulf %86, %52 : vector<8x64xf32>
    %91 = arith.mulf %85, %89 : vector<8x64xf32>
    %92 = arith.addf %90, %91 : vector<8x64xf32>
    %93 = math.tanh %92 : vector<8x64xf32>
    %94 = arith.mulf %87, %93 : vector<8x64xf32>
    %c2_i32 = arith.constant 2 : i32
    %95 = arith.index_cast %c2_i32 : i32 to index
    %c0_28 = arith.constant 0 : index
    %c0_29 = arith.constant 0 : index
    %96 = vector.load %arg10[%95, %c0_28, %c0_29] : memref<8x8x256xf32, #tpu.memory_space<vmem>>, vector<1x8x256xf32>
    %97 = vector.shape_cast %96 : vector<1x8x256xf32> to vector<8x256xf32>
    %cst_30 = arith.constant dense<0.000000e+00> : vector<8x256xf32>
    %98 = tpu.matmul %75, %12, %cst_30 {dimension_numbers = #tpu.dot_dimension_numbers<[1], [0], [0], [1], [0, 0, 1, 1], [], []>} : vector<8x64xf32>, vector<64x256xf32>, vector<8x256xf32> -> vector<8x256xf32>
    %99 = arith.addf %97, %98 : vector<8x256xf32>
    %100 = vector.extract_strided_slice %99 {offsets = [0, 0], sizes = [8, 192], strides = [1, 1]} : vector<8x256xf32> to vector<8x192xf32>
    %101 = arith.negf %100 : vector<8x192xf32>
    %102 = math.exp %101 : vector<8x192xf32>
    %cst_31 = arith.constant 1.000000e+00 : f32
    %103 = vector.broadcast %cst_31 : f32 to vector<8x192xf32>
    %104 = arith.addf %103, %102 : vector<8x192xf32>
    %105 = arith.divf %103, %104 : vector<8x192xf32>
    %106 = vector.extract_strided_slice %105 {offsets = [0, 0], sizes = [8, 64], strides = [1, 1]} : vector<8x192xf32> to vector<8x64xf32>
    %107 = vector.extract_strided_slice %105 {offsets = [0, 64], sizes = [8, 64], strides = [1, 1]} : vector<8x192xf32> to vector<8x64xf32>
    %108 = vector.extract_strided_slice %105 {offsets = [0, 128], sizes = [8, 64], strides = [1, 1]} : vector<8x192xf32> to vector<8x64xf32>
    %109 = vector.extract_strided_slice %99 {offsets = [0, 192], sizes = [8, 64], strides = [1, 1]} : vector<8x256xf32> to vector<8x64xf32>
    %110 = math.tanh %109 : vector<8x64xf32>
    %111 = arith.mulf %107, %73 : vector<8x64xf32>
    %112 = arith.mulf %106, %110 : vector<8x64xf32>
    %113 = arith.addf %111, %112 : vector<8x64xf32>
    %114 = math.tanh %113 : vector<8x64xf32>
    %115 = arith.mulf %108, %114 : vector<8x64xf32>
    %116 = tpu.concatenate %115, %94 in 1 : vector<8x64xf32>, vector<8x64xf32> -> vector<8x128xf32>
    %cst_32 = arith.constant dense<0.000000e+00> : vector<8x256xf32>
    %117 = tpu.matmul %116, %13, %cst_32 {dimension_numbers = #tpu.dot_dimension_numbers<[1], [0], [0], [1], [0, 0, 1, 1], [], []>} : vector<8x128xf32>, vector<128x256xf32>, vector<8x256xf32> -> vector<8x256xf32>
    %118 = arith.addf %117, %11 : vector<8x256xf32>
    %119 = vector.extract_strided_slice %118 {offsets = [0, 0], sizes = [8, 192], strides = [1, 1]} : vector<8x256xf32> to vector<8x192xf32>
    %120 = arith.negf %119 : vector<8x192xf32>
    %121 = math.exp %120 : vector<8x192xf32>
    %cst_33 = arith.constant 1.000000e+00 : f32
    %122 = vector.broadcast %cst_33 : f32 to vector<8x192xf32>
    %123 = arith.addf %122, %121 : vector<8x192xf32>
    %124 = arith.divf %122, %123 : vector<8x192xf32>
    %125 = vector.extract_strided_slice %124 {offsets = [0, 0], sizes = [8, 64], strides = [1, 1]} : vector<8x192xf32> to vector<8x64xf32>
    %126 = vector.extract_strided_slice %124 {offsets = [0, 64], sizes = [8, 64], strides = [1, 1]} : vector<8x192xf32> to vector<8x64xf32>
    %127 = vector.extract_strided_slice %124 {offsets = [0, 128], sizes = [8, 64], strides = [1, 1]} : vector<8x192xf32> to vector<8x64xf32>
    %128 = vector.extract_strided_slice %118 {offsets = [0, 192], sizes = [8, 64], strides = [1, 1]} : vector<8x256xf32> to vector<8x64xf32>
    %129 = math.tanh %128 : vector<8x64xf32>
    %130 = arith.mulf %126, %92 : vector<8x64xf32>
    %131 = arith.mulf %125, %129 : vector<8x64xf32>
    %132 = arith.addf %130, %131 : vector<8x64xf32>
    %133 = math.tanh %132 : vector<8x64xf32>
    %134 = arith.mulf %127, %133 : vector<8x64xf32>
    %c3_i32 = arith.constant 3 : i32
    %135 = arith.index_cast %c3_i32 : i32 to index
    %c0_34 = arith.constant 0 : index
    %c0_35 = arith.constant 0 : index
    %136 = vector.load %arg10[%135, %c0_34, %c0_35] : memref<8x8x256xf32, #tpu.memory_space<vmem>>, vector<1x8x256xf32>
    %137 = vector.shape_cast %136 : vector<1x8x256xf32> to vector<8x256xf32>
    %cst_36 = arith.constant dense<0.000000e+00> : vector<8x256xf32>
    %138 = tpu.matmul %115, %12, %cst_36 {dimension_numbers = #tpu.dot_dimension_numbers<[1], [0], [0], [1], [0, 0, 1, 1], [], []>} : vector<8x64xf32>, vector<64x256xf32>, vector<8x256xf32> -> vector<8x256xf32>
    %139 = arith.addf %137, %138 : vector<8x256xf32>
    %140 = vector.extract_strided_slice %139 {offsets = [0, 0], sizes = [8, 192], strides = [1, 1]} : vector<8x256xf32> to vector<8x192xf32>
    %141 = arith.negf %140 : vector<8x192xf32>
    %142 = math.exp %141 : vector<8x192xf32>
    %cst_37 = arith.constant 1.000000e+00 : f32
    %143 = vector.broadcast %cst_37 : f32 to vector<8x192xf32>
    %144 = arith.addf %143, %142 : vector<8x192xf32>
    %145 = arith.divf %143, %144 : vector<8x192xf32>
    %146 = vector.extract_strided_slice %145 {offsets = [0, 0], sizes = [8, 64], strides = [1, 1]} : vector<8x192xf32> to vector<8x64xf32>
    %147 = vector.extract_strided_slice %145 {offsets = [0, 64], sizes = [8, 64], strides = [1, 1]} : vector<8x192xf32> to vector<8x64xf32>
    %148 = vector.extract_strided_slice %145 {offsets = [0, 128], sizes = [8, 64], strides = [1, 1]} : vector<8x192xf32> to vector<8x64xf32>
    %149 = vector.extract_strided_slice %139 {offsets = [0, 192], sizes = [8, 64], strides = [1, 1]} : vector<8x256xf32> to vector<8x64xf32>
    %150 = math.tanh %149 : vector<8x64xf32>
    %151 = arith.mulf %147, %113 : vector<8x64xf32>
    %152 = arith.mulf %146, %150 : vector<8x64xf32>
    %153 = arith.addf %151, %152 : vector<8x64xf32>
    %154 = math.tanh %153 : vector<8x64xf32>
    %155 = arith.mulf %148, %154 : vector<8x64xf32>
    %156 = tpu.concatenate %155, %134 in 1 : vector<8x64xf32>, vector<8x64xf32> -> vector<8x128xf32>
    %cst_38 = arith.constant dense<0.000000e+00> : vector<8x256xf32>
    %157 = tpu.matmul %156, %13, %cst_38 {dimension_numbers = #tpu.dot_dimension_numbers<[1], [0], [0], [1], [0, 0, 1, 1], [], []>} : vector<8x128xf32>, vector<128x256xf32>, vector<8x256xf32> -> vector<8x256xf32>
    %158 = arith.addf %157, %11 : vector<8x256xf32>
    %159 = vector.extract_strided_slice %158 {offsets = [0, 0], sizes = [8, 192], strides = [1, 1]} : vector<8x256xf32> to vector<8x192xf32>
    %160 = arith.negf %159 : vector<8x192xf32>
    %161 = math.exp %160 : vector<8x192xf32>
    %cst_39 = arith.constant 1.000000e+00 : f32
    %162 = vector.broadcast %cst_39 : f32 to vector<8x192xf32>
    %163 = arith.addf %162, %161 : vector<8x192xf32>
    %164 = arith.divf %162, %163 : vector<8x192xf32>
    %165 = vector.extract_strided_slice %164 {offsets = [0, 0], sizes = [8, 64], strides = [1, 1]} : vector<8x192xf32> to vector<8x64xf32>
    %166 = vector.extract_strided_slice %164 {offsets = [0, 64], sizes = [8, 64], strides = [1, 1]} : vector<8x192xf32> to vector<8x64xf32>
    %167 = vector.extract_strided_slice %164 {offsets = [0, 128], sizes = [8, 64], strides = [1, 1]} : vector<8x192xf32> to vector<8x64xf32>
    %168 = vector.extract_strided_slice %158 {offsets = [0, 192], sizes = [8, 64], strides = [1, 1]} : vector<8x256xf32> to vector<8x64xf32>
    %169 = math.tanh %168 : vector<8x64xf32>
    %170 = arith.mulf %166, %132 : vector<8x64xf32>
    %171 = arith.mulf %165, %169 : vector<8x64xf32>
    %172 = arith.addf %170, %171 : vector<8x64xf32>
    %173 = math.tanh %172 : vector<8x64xf32>
    %174 = arith.mulf %167, %173 : vector<8x64xf32>
    %c4_i32 = arith.constant 4 : i32
    %175 = arith.index_cast %c4_i32 : i32 to index
    %c0_40 = arith.constant 0 : index
    %c0_41 = arith.constant 0 : index
    %176 = vector.load %arg10[%175, %c0_40, %c0_41] : memref<8x8x256xf32, #tpu.memory_space<vmem>>, vector<1x8x256xf32>
    %177 = vector.shape_cast %176 : vector<1x8x256xf32> to vector<8x256xf32>
    %cst_42 = arith.constant dense<0.000000e+00> : vector<8x256xf32>
    %178 = tpu.matmul %155, %12, %cst_42 {dimension_numbers = #tpu.dot_dimension_numbers<[1], [0], [0], [1], [0, 0, 1, 1], [], []>} : vector<8x64xf32>, vector<64x256xf32>, vector<8x256xf32> -> vector<8x256xf32>
    %179 = arith.addf %177, %178 : vector<8x256xf32>
    %180 = vector.extract_strided_slice %179 {offsets = [0, 0], sizes = [8, 192], strides = [1, 1]} : vector<8x256xf32> to vector<8x192xf32>
    %181 = arith.negf %180 : vector<8x192xf32>
    %182 = math.exp %181 : vector<8x192xf32>
    %cst_43 = arith.constant 1.000000e+00 : f32
    %183 = vector.broadcast %cst_43 : f32 to vector<8x192xf32>
    %184 = arith.addf %183, %182 : vector<8x192xf32>
    %185 = arith.divf %183, %184 : vector<8x192xf32>
    %186 = vector.extract_strided_slice %185 {offsets = [0, 0], sizes = [8, 64], strides = [1, 1]} : vector<8x192xf32> to vector<8x64xf32>
    %187 = vector.extract_strided_slice %185 {offsets = [0, 64], sizes = [8, 64], strides = [1, 1]} : vector<8x192xf32> to vector<8x64xf32>
    %188 = vector.extract_strided_slice %185 {offsets = [0, 128], sizes = [8, 64], strides = [1, 1]} : vector<8x192xf32> to vector<8x64xf32>
    %189 = vector.extract_strided_slice %179 {offsets = [0, 192], sizes = [8, 64], strides = [1, 1]} : vector<8x256xf32> to vector<8x64xf32>
    %190 = math.tanh %189 : vector<8x64xf32>
    %191 = arith.mulf %187, %153 : vector<8x64xf32>
    %192 = arith.mulf %186, %190 : vector<8x64xf32>
    %193 = arith.addf %191, %192 : vector<8x64xf32>
    %194 = math.tanh %193 : vector<8x64xf32>
    %195 = arith.mulf %188, %194 : vector<8x64xf32>
    %196 = tpu.concatenate %195, %174 in 1 : vector<8x64xf32>, vector<8x64xf32> -> vector<8x128xf32>
    %cst_44 = arith.constant dense<0.000000e+00> : vector<8x256xf32>
    %197 = tpu.matmul %196, %13, %cst_44 {dimension_numbers = #tpu.dot_dimension_numbers<[1], [0], [0], [1], [0, 0, 1, 1], [], []>} : vector<8x128xf32>, vector<128x256xf32>, vector<8x256xf32> -> vector<8x256xf32>
    %198 = arith.addf %197, %11 : vector<8x256xf32>
    %199 = vector.extract_strided_slice %198 {offsets = [0, 0], sizes = [8, 192], strides = [1, 1]} : vector<8x256xf32> to vector<8x192xf32>
    %200 = arith.negf %199 : vector<8x192xf32>
    %201 = math.exp %200 : vector<8x192xf32>
    %cst_45 = arith.constant 1.000000e+00 : f32
    %202 = vector.broadcast %cst_45 : f32 to vector<8x192xf32>
    %203 = arith.addf %202, %201 : vector<8x192xf32>
    %204 = arith.divf %202, %203 : vector<8x192xf32>
    %205 = vector.extract_strided_slice %204 {offsets = [0, 0], sizes = [8, 64], strides = [1, 1]} : vector<8x192xf32> to vector<8x64xf32>
    %206 = vector.extract_strided_slice %204 {offsets = [0, 64], sizes = [8, 64], strides = [1, 1]} : vector<8x192xf32> to vector<8x64xf32>
    %207 = vector.extract_strided_slice %204 {offsets = [0, 128], sizes = [8, 64], strides = [1, 1]} : vector<8x192xf32> to vector<8x64xf32>
    %208 = vector.extract_strided_slice %198 {offsets = [0, 192], sizes = [8, 64], strides = [1, 1]} : vector<8x256xf32> to vector<8x64xf32>
    %209 = math.tanh %208 : vector<8x64xf32>
    %210 = arith.mulf %206, %172 : vector<8x64xf32>
    %211 = arith.mulf %205, %209 : vector<8x64xf32>
    %212 = arith.addf %210, %211 : vector<8x64xf32>
    %213 = math.tanh %212 : vector<8x64xf32>
    %214 = arith.mulf %207, %213 : vector<8x64xf32>
    %c5_i32 = arith.constant 5 : i32
    %215 = arith.index_cast %c5_i32 : i32 to index
    %c0_46 = arith.constant 0 : index
    %c0_47 = arith.constant 0 : index
    %216 = vector.load %arg10[%215, %c0_46, %c0_47] : memref<8x8x256xf32, #tpu.memory_space<vmem>>, vector<1x8x256xf32>
    %217 = vector.shape_cast %216 : vector<1x8x256xf32> to vector<8x256xf32>
    %cst_48 = arith.constant dense<0.000000e+00> : vector<8x256xf32>
    %218 = tpu.matmul %195, %12, %cst_48 {dimension_numbers = #tpu.dot_dimension_numbers<[1], [0], [0], [1], [0, 0, 1, 1], [], []>} : vector<8x64xf32>, vector<64x256xf32>, vector<8x256xf32> -> vector<8x256xf32>
    %219 = arith.addf %217, %218 : vector<8x256xf32>
    %220 = vector.extract_strided_slice %219 {offsets = [0, 0], sizes = [8, 192], strides = [1, 1]} : vector<8x256xf32> to vector<8x192xf32>
    %221 = arith.negf %220 : vector<8x192xf32>
    %222 = math.exp %221 : vector<8x192xf32>
    %cst_49 = arith.constant 1.000000e+00 : f32
    %223 = vector.broadcast %cst_49 : f32 to vector<8x192xf32>
    %224 = arith.addf %223, %222 : vector<8x192xf32>
    %225 = arith.divf %223, %224 : vector<8x192xf32>
    %226 = vector.extract_strided_slice %225 {offsets = [0, 0], sizes = [8, 64], strides = [1, 1]} : vector<8x192xf32> to vector<8x64xf32>
    %227 = vector.extract_strided_slice %225 {offsets = [0, 64], sizes = [8, 64], strides = [1, 1]} : vector<8x192xf32> to vector<8x64xf32>
    %228 = vector.extract_strided_slice %225 {offsets = [0, 128], sizes = [8, 64], strides = [1, 1]} : vector<8x192xf32> to vector<8x64xf32>
    %229 = vector.extract_strided_slice %219 {offsets = [0, 192], sizes = [8, 64], strides = [1, 1]} : vector<8x256xf32> to vector<8x64xf32>
    %230 = math.tanh %229 : vector<8x64xf32>
    %231 = arith.mulf %227, %193 : vector<8x64xf32>
    %232 = arith.mulf %226, %230 : vector<8x64xf32>
    %233 = arith.addf %231, %232 : vector<8x64xf32>
    %234 = math.tanh %233 : vector<8x64xf32>
    %235 = arith.mulf %228, %234 : vector<8x64xf32>
    %236 = tpu.concatenate %235, %214 in 1 : vector<8x64xf32>, vector<8x64xf32> -> vector<8x128xf32>
    %cst_50 = arith.constant dense<0.000000e+00> : vector<8x256xf32>
    %237 = tpu.matmul %236, %13, %cst_50 {dimension_numbers = #tpu.dot_dimension_numbers<[1], [0], [0], [1], [0, 0, 1, 1], [], []>} : vector<8x128xf32>, vector<128x256xf32>, vector<8x256xf32> -> vector<8x256xf32>
    %238 = arith.addf %237, %11 : vector<8x256xf32>
    %239 = vector.extract_strided_slice %238 {offsets = [0, 0], sizes = [8, 192], strides = [1, 1]} : vector<8x256xf32> to vector<8x192xf32>
    %240 = arith.negf %239 : vector<8x192xf32>
    %241 = math.exp %240 : vector<8x192xf32>
    %cst_51 = arith.constant 1.000000e+00 : f32
    %242 = vector.broadcast %cst_51 : f32 to vector<8x192xf32>
    %243 = arith.addf %242, %241 : vector<8x192xf32>
    %244 = arith.divf %242, %243 : vector<8x192xf32>
    %245 = vector.extract_strided_slice %244 {offsets = [0, 0], sizes = [8, 64], strides = [1, 1]} : vector<8x192xf32> to vector<8x64xf32>
    %246 = vector.extract_strided_slice %244 {offsets = [0, 64], sizes = [8, 64], strides = [1, 1]} : vector<8x192xf32> to vector<8x64xf32>
    %247 = vector.extract_strided_slice %244 {offsets = [0, 128], sizes = [8, 64], strides = [1, 1]} : vector<8x192xf32> to vector<8x64xf32>
    %248 = vector.extract_strided_slice %238 {offsets = [0, 192], sizes = [8, 64], strides = [1, 1]} : vector<8x256xf32> to vector<8x64xf32>
    %249 = math.tanh %248 : vector<8x64xf32>
    %250 = arith.mulf %246, %212 : vector<8x64xf32>
    %251 = arith.mulf %245, %249 : vector<8x64xf32>
    %252 = arith.addf %250, %251 : vector<8x64xf32>
    %253 = math.tanh %252 : vector<8x64xf32>
    %254 = arith.mulf %247, %253 : vector<8x64xf32>
    %c6_i32 = arith.constant 6 : i32
    %255 = arith.index_cast %c6_i32 : i32 to index
    %c0_52 = arith.constant 0 : index
    %c0_53 = arith.constant 0 : index
    %256 = vector.load %arg10[%255, %c0_52, %c0_53] : memref<8x8x256xf32, #tpu.memory_space<vmem>>, vector<1x8x256xf32>
    %257 = vector.shape_cast %256 : vector<1x8x256xf32> to vector<8x256xf32>
    %cst_54 = arith.constant dense<0.000000e+00> : vector<8x256xf32>
    %258 = tpu.matmul %235, %12, %cst_54 {dimension_numbers = #tpu.dot_dimension_numbers<[1], [0], [0], [1], [0, 0, 1, 1], [], []>} : vector<8x64xf32>, vector<64x256xf32>, vector<8x256xf32> -> vector<8x256xf32>
    %259 = arith.addf %257, %258 : vector<8x256xf32>
    %260 = vector.extract_strided_slice %259 {offsets = [0, 0], sizes = [8, 192], strides = [1, 1]} : vector<8x256xf32> to vector<8x192xf32>
    %261 = arith.negf %260 : vector<8x192xf32>
    %262 = math.exp %261 : vector<8x192xf32>
    %cst_55 = arith.constant 1.000000e+00 : f32
    %263 = vector.broadcast %cst_55 : f32 to vector<8x192xf32>
    %264 = arith.addf %263, %262 : vector<8x192xf32>
    %265 = arith.divf %263, %264 : vector<8x192xf32>
    %266 = vector.extract_strided_slice %265 {offsets = [0, 0], sizes = [8, 64], strides = [1, 1]} : vector<8x192xf32> to vector<8x64xf32>
    %267 = vector.extract_strided_slice %265 {offsets = [0, 64], sizes = [8, 64], strides = [1, 1]} : vector<8x192xf32> to vector<8x64xf32>
    %268 = vector.extract_strided_slice %265 {offsets = [0, 128], sizes = [8, 64], strides = [1, 1]} : vector<8x192xf32> to vector<8x64xf32>
    %269 = vector.extract_strided_slice %259 {offsets = [0, 192], sizes = [8, 64], strides = [1, 1]} : vector<8x256xf32> to vector<8x64xf32>
    %270 = math.tanh %269 : vector<8x64xf32>
    %271 = arith.mulf %267, %233 : vector<8x64xf32>
    %272 = arith.mulf %266, %270 : vector<8x64xf32>
    %273 = arith.addf %271, %272 : vector<8x64xf32>
    %274 = math.tanh %273 : vector<8x64xf32>
    %275 = arith.mulf %268, %274 : vector<8x64xf32>
    %276 = tpu.concatenate %275, %254 in 1 : vector<8x64xf32>, vector<8x64xf32> -> vector<8x128xf32>
    %cst_56 = arith.constant dense<0.000000e+00> : vector<8x256xf32>
    %277 = tpu.matmul %276, %13, %cst_56 {dimension_numbers = #tpu.dot_dimension_numbers<[1], [0], [0], [1], [0, 0, 1, 1], [], []>} : vector<8x128xf32>, vector<128x256xf32>, vector<8x256xf32> -> vector<8x256xf32>
    %278 = arith.addf %277, %11 : vector<8x256xf32>
    %279 = vector.extract_strided_slice %278 {offsets = [0, 0], sizes = [8, 192], strides = [1, 1]} : vector<8x256xf32> to vector<8x192xf32>
    %280 = arith.negf %279 : vector<8x192xf32>
    %281 = math.exp %280 : vector<8x192xf32>
    %cst_57 = arith.constant 1.000000e+00 : f32
    %282 = vector.broadcast %cst_57 : f32 to vector<8x192xf32>
    %283 = arith.addf %282, %281 : vector<8x192xf32>
    %284 = arith.divf %282, %283 : vector<8x192xf32>
    %285 = vector.extract_strided_slice %284 {offsets = [0, 0], sizes = [8, 64], strides = [1, 1]} : vector<8x192xf32> to vector<8x64xf32>
    %286 = vector.extract_strided_slice %284 {offsets = [0, 64], sizes = [8, 64], strides = [1, 1]} : vector<8x192xf32> to vector<8x64xf32>
    %287 = vector.extract_strided_slice %284 {offsets = [0, 128], sizes = [8, 64], strides = [1, 1]} : vector<8x192xf32> to vector<8x64xf32>
    %288 = vector.extract_strided_slice %278 {offsets = [0, 192], sizes = [8, 64], strides = [1, 1]} : vector<8x256xf32> to vector<8x64xf32>
    %289 = math.tanh %288 : vector<8x64xf32>
    %290 = arith.mulf %286, %252 : vector<8x64xf32>
    %291 = arith.mulf %285, %289 : vector<8x64xf32>
    %292 = arith.addf %290, %291 : vector<8x64xf32>
    %293 = math.tanh %292 : vector<8x64xf32>
    %294 = arith.mulf %287, %293 : vector<8x64xf32>
    %c7_i32 = arith.constant 7 : i32
    %295 = arith.index_cast %c7_i32 : i32 to index
    %c0_58 = arith.constant 0 : index
    %c0_59 = arith.constant 0 : index
    %296 = vector.load %arg10[%295, %c0_58, %c0_59] : memref<8x8x256xf32, #tpu.memory_space<vmem>>, vector<1x8x256xf32>
    %297 = vector.shape_cast %296 : vector<1x8x256xf32> to vector<8x256xf32>
    %cst_60 = arith.constant dense<0.000000e+00> : vector<8x256xf32>
    %298 = tpu.matmul %275, %12, %cst_60 {dimension_numbers = #tpu.dot_dimension_numbers<[1], [0], [0], [1], [0, 0, 1, 1], [], []>} : vector<8x64xf32>, vector<64x256xf32>, vector<8x256xf32> -> vector<8x256xf32>
    %299 = arith.addf %297, %298 : vector<8x256xf32>
    %300 = vector.extract_strided_slice %299 {offsets = [0, 0], sizes = [8, 192], strides = [1, 1]} : vector<8x256xf32> to vector<8x192xf32>
    %301 = arith.negf %300 : vector<8x192xf32>
    %302 = math.exp %301 : vector<8x192xf32>
    %cst_61 = arith.constant 1.000000e+00 : f32
    %303 = vector.broadcast %cst_61 : f32 to vector<8x192xf32>
    %304 = arith.addf %303, %302 : vector<8x192xf32>
    %305 = arith.divf %303, %304 : vector<8x192xf32>
    %306 = vector.extract_strided_slice %305 {offsets = [0, 0], sizes = [8, 64], strides = [1, 1]} : vector<8x192xf32> to vector<8x64xf32>
    %307 = vector.extract_strided_slice %305 {offsets = [0, 64], sizes = [8, 64], strides = [1, 1]} : vector<8x192xf32> to vector<8x64xf32>
    %308 = vector.extract_strided_slice %305 {offsets = [0, 128], sizes = [8, 64], strides = [1, 1]} : vector<8x192xf32> to vector<8x64xf32>
    %309 = vector.extract_strided_slice %299 {offsets = [0, 192], sizes = [8, 64], strides = [1, 1]} : vector<8x256xf32> to vector<8x64xf32>
    %310 = math.tanh %309 : vector<8x64xf32>
    %311 = arith.mulf %307, %273 : vector<8x64xf32>
    %312 = arith.mulf %306, %310 : vector<8x64xf32>
    %313 = arith.addf %311, %312 : vector<8x64xf32>
    %314 = math.tanh %313 : vector<8x64xf32>
    %315 = arith.mulf %308, %314 : vector<8x64xf32>
    %316 = tpu.concatenate %315, %294 in 1 : vector<8x64xf32>, vector<8x64xf32> -> vector<8x128xf32>
    %cst_62 = arith.constant dense<0.000000e+00> : vector<8x256xf32>
    %317 = tpu.matmul %316, %13, %cst_62 {dimension_numbers = #tpu.dot_dimension_numbers<[1], [0], [0], [1], [0, 0, 1, 1], [], []>} : vector<8x128xf32>, vector<128x256xf32>, vector<8x256xf32> -> vector<8x256xf32>
    %318 = arith.addf %317, %11 : vector<8x256xf32>
    %319 = vector.extract_strided_slice %318 {offsets = [0, 0], sizes = [8, 192], strides = [1, 1]} : vector<8x256xf32> to vector<8x192xf32>
    %320 = arith.negf %319 : vector<8x192xf32>
    %321 = math.exp %320 : vector<8x192xf32>
    %cst_63 = arith.constant 1.000000e+00 : f32
    %322 = vector.broadcast %cst_63 : f32 to vector<8x192xf32>
    %323 = arith.addf %322, %321 : vector<8x192xf32>
    %324 = arith.divf %322, %323 : vector<8x192xf32>
    %325 = vector.extract_strided_slice %324 {offsets = [0, 0], sizes = [8, 64], strides = [1, 1]} : vector<8x192xf32> to vector<8x64xf32>
    %326 = vector.extract_strided_slice %324 {offsets = [0, 64], sizes = [8, 64], strides = [1, 1]} : vector<8x192xf32> to vector<8x64xf32>
    %327 = vector.extract_strided_slice %324 {offsets = [0, 128], sizes = [8, 64], strides = [1, 1]} : vector<8x192xf32> to vector<8x64xf32>
    %328 = vector.extract_strided_slice %318 {offsets = [0, 192], sizes = [8, 64], strides = [1, 1]} : vector<8x256xf32> to vector<8x64xf32>
    %329 = math.tanh %328 : vector<8x64xf32>
    %330 = arith.mulf %326, %292 : vector<8x64xf32>
    %331 = arith.mulf %325, %329 : vector<8x64xf32>
    %332 = arith.addf %330, %331 : vector<8x64xf32>
    %333 = math.tanh %332 : vector<8x64xf32>
    %334 = arith.mulf %327, %333 : vector<8x64xf32>
    %c8_i32 = arith.constant 8 : i32
    %c0_64 = arith.constant 0 : index
    %c0_65 = arith.constant 0 : index
    %335 = vector.load %arg7[%c0_64, %c0_65] : memref<1x64xf32, #tpu.memory_space<vmem>>, vector<1x64xf32>
    %336 = vector.broadcast %335 : vector<1x64xf32> to vector<8x64xf32>
    %337 = arith.mulf %334, %336 : vector<8x64xf32>
    %cst_66 = arith.constant dense<0.000000e+00> : vector<8xf32>
    %338 = vector.multi_reduction <add>, %337, %cst_66 [1] : vector<8x64xf32> to vector<8xf32>
    %339 = vector.shape_cast %338 : vector<8xf32> to vector<8x1xf32>
    %c0_67 = arith.constant 0 : index
    %c0_68 = arith.constant 0 : index
    %340 = vector.load %arg8[%c0_67, %c0_68] : memref<1x1xf32, #tpu.memory_space<vmem>>, vector<1x1xf32>
    %341 = vector.broadcast %340 : vector<1x1xf32> to vector<8x1xf32>
    %342 = arith.addf %339, %341 : vector<8x1xf32>
    %c0_69 = arith.constant 0 : index
    %c0_70 = arith.constant 0 : index
    %343 = vector.load %arg9[%c0_69, %c0_70] : memref<8x1xf32, #tpu.memory_space<vmem>>, vector<8x1xf32>
    tpu.vector_store %arg9[%c0_69, %c0_70], %342 {strides = array<i32>} : memref<8x1xf32, #tpu.memory_space<vmem>>, vector<8x1xf32>,
    return
  }
  func.func @transform_0(%arg0: i32) -> (i32, i32, i32) {
    %c0_i32 = arith.constant 0 : i32
    %c0_i32_0 = arith.constant 0 : i32
    %c0_i32_1 = arith.constant 0 : i32
    return %c0_i32, %arg0, %c0_i32_0 : i32, i32, i32
  }
  func.func @transform_1(%arg0: i32) -> (i32, i32) {
    %c0_i32 = arith.constant 0 : i32
    %c0_i32_0 = arith.constant 0 : i32
    %c0_i32_1 = arith.constant 0 : i32
    return %c0_i32, %c0_i32_0 : i32, i32
  }
  func.func @transform_2(%arg0: i32) -> (i32, i32) {
    %c0_i32 = arith.constant 0 : i32
    %c0_i32_0 = arith.constant 0 : i32
    %c0_i32_1 = arith.constant 0 : i32
    return %c0_i32, %c0_i32_0 : i32, i32
  }
  func.func @transform_3(%arg0: i32) -> (i32, i32) {
    %c0_i32 = arith.constant 0 : i32
    %c0_i32_0 = arith.constant 0 : i32
    %c0_i32_1 = arith.constant 0 : i32
    return %c0_i32, %c0_i32_0 : i32, i32
  }
  func.func @transform_4(%arg0: i32) -> (i32, i32) {
    %c0_i32 = arith.constant 0 : i32
    %c0_i32_0 = arith.constant 0 : i32
    %c0_i32_1 = arith.constant 0 : i32
    return %c0_i32, %c0_i32_0 : i32, i32
  }
  func.func @transform_5(%arg0: i32) -> (i32, i32) {
    %c0_i32 = arith.constant 0 : i32
    %c0_i32_0 = arith.constant 0 : i32
    %c0_i32_1 = arith.constant 0 : i32
    return %c0_i32, %c0_i32_0 : i32, i32
  }
  func.func @transform_6(%arg0: i32) -> (i32, i32) {
    %c0_i32 = arith.constant 0 : i32
    %c0_i32_0 = arith.constant 0 : i32
    %c0_i32_1 = arith.constant 0 : i32
    return %c0_i32, %c0_i32_0 : i32, i32
  }
  func.func @transform_7(%arg0: i32) -> (i32, i32) {
    %c0_i32 = arith.constant 0 : i32
    %c0_i32_0 = arith.constant 0 : i32
    %c0_i32_1 = arith.constant 0 : i32
    return %c0_i32, %c0_i32_0 : i32, i32
  }
  func.func @transform_8(%arg0: i32) -> (i32, i32) {
    %c0_i32 = arith.constant 0 : i32
    %c0_i32_0 = arith.constant 0 : i32
    return %arg0, %c0_i32 : i32, i32
  }
}

</mosaic_0001>

<llo_original>
// kernel: tpu_custom_call.1
$region0: #{tpu_custom_call.1}
  #allocation0 [shape = 'u32[]', space=smem, size = 0x4, offset = 0x4, fixed_abs, tag = 'smem constant byte address 0x4 - core index']
  #allocation1 [shape = 'u32[144,128]{1,0:T(1,128)}', space=vmem, size = 0x12000, scoped, tag = 'internal scratch']
  #allocation2 [shape = 'f32[8,8,256]{2,1,0:T(8,128)}', space=vmem, size = 0x10000, scoped, tag = 'scratch operand']
  #allocation3 [shape = 'f32[1,1]{1,0:T(1,128)S(1)}', space=vmem, size = 0x200, scoped, tag = 'scoped memory for tpu_custom_call.1']
  %s0 = inlined_call_operand.hbm [shape: f32[8,8,8], index: 0, kind: input, shape index: {}]
  %s1 = inlined_call_operand.hbm [shape: f32[8,256], index: 1, kind: input, shape index: {}]
  %s2 = inlined_call_operand.hbm [shape: f32[64,256], index: 2, kind: input, shape index: {}]
  %s3 = inlined_call_operand.vmem [shape: f32[1,256], index: 3, kind: input, shape index: {}]
  %s4 = inlined_call_operand.hbm [shape: f32[128,256], index: 4, kind: input, shape index: {}]
  %s5 = inlined_call_operand.vmem [shape: f32[1,256], index: 5, kind: input, shape index: {}]
  %s6 = inlined_call_operand.vmem [shape: f32[1,64], index: 6, kind: input, shape index: {}]
  %s7 = inlined_call_operand.<no memory space> [shape: f32[1,1], index: 7, kind: input, shape index: {}]
  %s8 = inlined_call_operand.vmem [shape: f32[8,1], index: 8, kind: output, shape index: {}]
  %s9 = sld [smem:[#allocation0]]
  $region58: #{tpu_custom_call.1} parent=0
    _
  %s11 = ssub.s32 1, %s9
  %s12 = scalar_select 0, %s11, %s9
  %v13 = vstv %s7
  %14 = vst [vmem:[#allocation3] sm:$0x1] %v13
  $region1: #{tpu_custom_call.1} parent=0
    #allocation4 [shape = 'u8[32768]{0}', space=vmem, size = 0x8000, scoped, tag = 'input window, operand 0, single buffered']
    #allocation5 [shape = 's32[1]{0}', space=sflag, size = 0x4, scoped, tag = 'scoped memory for tpu_custom_call.1']
    #allocation6 [shape = 'u8[8192]{0}', space=vmem, size = 0x2000, scoped, tag = 'input window, operand 1, single buffered']
    #allocation7 [shape = 's32[1]{0}', space=sflag, size = 0x4, scoped, tag = 'scoped memory for tpu_custom_call.1']
    #allocation8 [shape = 'u8[65536]{0}', space=vmem, size = 0x10000, scoped, tag = 'input window, operand 2, single buffered']
    #allocation9 [shape = 'u8[131072]{0}', space=vmem, size = 0x20000, scoped, tag = 'input window, operand 4, single buffered']
    #allocation10 [shape = 's32[1]{0}', space=sflag, size = 0x4, scoped, tag = 'scoped memory for tpu_custom_call.1']
    %15 = vsyncpa [#allocation5], 0
    %16 = vsyncpa [#allocation7], 0
    %17 = vsyncpa [#allocation10], 0
    // Predicated region
    $region2: #{tpu_custom_call.1} parent=1 // pred_check
      _
    $region3: #{tpu_custom_call.1} parent=1 // pred_check_branch
      %19 = sbr.rel (0) target = $region5
    $region4: #{tpu_custom_call.1} parent=1 // pred_region
      %s21 = ssub.s32 1024, 1024
      %22 = vsyncadd [#allocation5], %s21
      %s23 = sshll.u32 [#allocation4], 4
      %s24 = int_to_ptr.vmem [resolvable:$true] %s23
      %29 = dma.hbm_to_vmem [thread:$0]  %s0, 1024, %s24, [#allocation5], 128, 128, 8
    $region5: #{tpu_custom_call.1} parent=1 // pred_fallthru
      _
    // Predicated region
    $region6: #{tpu_custom_call.1} parent=1 // pred_check
      _
    $region7: #{tpu_custom_call.1} parent=1 // pred_check_branch
      %31 = sbr.rel (0) target = $region9
    $region8: #{tpu_custom_call.1} parent=1 // pred_region
      %s33 = ssub.s32 256, 256
      %34 = vsyncadd [#allocation7], %s33
      %s36 = sshll.u32 [#allocation6], 4
      %s37 = int_to_ptr.vmem [resolvable:$true] %s36
      %39 = dma.hbm_to_vmem [thread:$0]  %s1, 256, %s37, [#allocation7]
    $region9: #{tpu_custom_call.1} parent=1 // pred_fallthru
      _
    // Predicated region
    $region10: #{tpu_custom_call.1} parent=1 // pred_check
      _
    $region11: #{tpu_custom_call.1} parent=1 // pred_check_branch
      %41 = sbr.rel (0) target = $region13
    $region12: #{tpu_custom_call.1} parent=1 // pred_region
      %s43 = ssub.s32 2048, 2048
      %44 = vsyncadd [#allocation7], %s43
      %s45 = sshll.u32 [#allocation8], 4
      %s46 = int_to_ptr.vmem [resolvable:$true] %s45
      %51 = dma.hbm_to_vmem [thread:$0]  %s2, 2048, %s46, [#allocation7], 256, 256, 16
    $region13: #{tpu_custom_call.1} parent=1 // pred_fallthru
      _
    // Predicated region
    $region14: #{tpu_custom_call.1} parent=1 // pred_check
      _
    $region15: #{tpu_custom_call.1} parent=1 // pred_check_branch
      %53 = sbr.rel (0) target = $region17
    $region16: #{tpu_custom_call.1} parent=1 // pred_region
      _
    $region17: #{tpu_custom_call.1} parent=1 // pred_fallthru
      _
    // Predicated region
    $region18: #{tpu_custom_call.1} parent=1 // pred_check
      _
    $region19: #{tpu_custom_call.1} parent=1 // pred_check_branch
      %55 = sbr.rel (0) target = $region21
    $region20: #{tpu_custom_call.1} parent=1 // pred_region
      %s57 = ssub.s32 4096, 4096
      %58 = vsyncadd [#allocation10], %s57
      %s59 = sshll.u32 [#allocation9], 4
      %s60 = int_to_ptr.vmem [resolvable:$true] %s59
      %65 = dma.hbm_to_vmem [thread:$0]  %s4, 4096, %s60, [#allocation10], 256, 256, 16
    $region21: #{tpu_custom_call.1} parent=1 // pred_fallthru
      _
    // Predicated region
    $region22: #{tpu_custom_call.1} parent=1 // pred_check
      _
    $region23: #{tpu_custom_call.1} parent=1 // pred_check_branch
      %67 = sbr.rel (0) target = $region25
    $region24: #{tpu_custom_call.1} parent=1 // pred_region
      _
    $region25: #{tpu_custom_call.1} parent=1 // pred_fallthru
      _
    // Predicated region
    $region26: #{tpu_custom_call.1} parent=1 // pred_check
      _
    $region27: #{tpu_custom_call.1} parent=1 // pred_check_branch
      %69 = sbr.rel (0) target = $region29
    $region28: #{tpu_custom_call.1} parent=1 // pred_region
      _
    $region29: #{tpu_custom_call.1} parent=1 // pred_fallthru
      _
    // Predicated region
    $region30: #{tpu_custom_call.1} parent=1 // pred_check
      _
    $region31: #{tpu_custom_call.1} parent=1 // pred_check_branch
      %71 = sbr.rel (0) target = $region33
    $region32: #{tpu_custom_call.1} parent=1 // pred_region
      _
    $region33: #{tpu_custom_call.1} parent=1 // pred_fallthru
      _
    // Predicated region
    $region34: #{tpu_custom_call.1} parent=1 // pred_check
      _
    $region35: #{tpu_custom_call.1} parent=1 // pred_check_branch
      %73 = sbr.rel (0) target = $region37
    $region36: #{tpu_custom_call.1} parent=1 // pred_region
      %74 = dma.done [#allocation5], 1024
    $region37: #{tpu_custom_call.1} parent=1 // pred_fallthru
      _
    // Predicated region
    $region38: #{tpu_custom_call.1} parent=1 // pred_check
      _
    $region39: #{tpu_custom_call.1} parent=1 // pred_check_branch
      %76 = sbr.rel (0) target = $region41
    $region40: #{tpu_custom_call.1} parent=1 // pred_region
      %77 = dma.done [#allocation7], 256
    $region41: #{tpu_custom_call.1} parent=1 // pred_fallthru
      _
    // Predicated region
    $region42: #{tpu_custom_call.1} parent=1 // pred_check
      _
    $region43: #{tpu_custom_call.1} parent=1 // pred_check_branch
      %79 = sbr.rel (0) target = $region45
    $region44: #{tpu_custom_call.1} parent=1 // pred_region
      %80 = dma.done [#allocation7], 2048
    $region45: #{tpu_custom_call.1} parent=1 // pred_fallthru
      _
    // Predicated region
    $region46: #{tpu_custom_call.1} parent=1 // pred_check
      _
    $region47: #{tpu_custom_call.1} parent=1 // pred_check_branch
      %82 = sbr.rel (0) target = $region49
    $region48: #{tpu_custom_call.1} parent=1 // pred_region
      %83 = dma.done [#allocation10], 4096
    $region49: #{tpu_custom_call.1} parent=1 // pred_fallthru
      _
    %v84 = vld [vmem:[#allocation4] sm:$0xff]
    %v85 = vld [vmem:[#allocation4 + $0x8] sm:$0xff]
    %v86 = vld [vmem:[#allocation4 + $0x10] sm:$0xff]
    %v87 = vld [vmem:[#allocation4 + $0x18] sm:$0xff]
    %v88 = vld [vmem:[#allocation4 + $0x20] sm:$0xff]
    %v89 = vld [vmem:[#allocation4 + $0x28] sm:$0xff]
    %v90 = vld [vmem:[#allocation4 + $0x30] sm:$0xff]
    %v91 = vld [vmem:[#allocation4 + $0x38] sm:$0xff]
    %v92 = vld [vmem:[#allocation6] sm:$0xff]
    %v93 = vld [vmem:[#allocation6 + $0x8] sm:$0xff]
    %v94 = vld [vmem:[%s3] sm:$0x3]
    %v96 = vlaneseq
    %v97 = vshrl.u32 %v96, 7
    %v98 = vsub.s32 0, %v97
    %v99 = vrot.slane %v94, %v98
    %v100 = vlaneseq
    %v101 = vshrl.u32 %v100, 7
    %v102 = vsub.s32 1, %v101
    %v103 = vrot.slane %v94, %v102
    %vm106 = vcmask 64512
    %v108 = vsel %vm106, %v84, 0
    %v111 = vsel %vm106, %v85, 0
    %v114 = vsel %vm106, %v86, 0
    %v117 = vsel %vm106, %v87, 0
    %v120 = vsel %vm106, %v88, 0
    %v123 = vsel %vm106, %v89, 0
    %v126 = vsel %vm106, %v90, 0
    %v129 = vsel %vm106, %v91, 0
    %131 = vmatprep.subr.mxu0 0.0
    %132 = vmatpush1.msra.mxu0 0.0
    %133 = vmatprep.subr.mxu0 0.0
    %134 = vmatpush1.msra.mxu0 0.0
    %135 = vmatprep.subr.mxu0 0.0
    %136 = vmatpush1.msra.mxu0 0.0
    %137 = vmatprep.subr.mxu0 0.0
    %138 = vmatpush1.msra.mxu0 0.0
    %139 = vmatprep.subr.mxu0 0.0
    %140 = vmatpush1.msra.mxu0 0.0
    %141 = vmatprep.subr.mxu0 0.0
    %142 = vmatpush1.msra.mxu0 0.0
    %143 = vmatprep.subr.mxu0 0.0
    %144 = vmatpush1.msra.mxu0 0.0
    %145 = vmatprep.subr.mxu0 0.0
    %146 = vmatpush1.msra.mxu0 0.0
    %147 = vmatprep.subr.mxu0 0.0
    %148 = vmatpush1.msra.mxu0 0.0
    %149 = vmatprep.subr.mxu0 0.0
    %150 = vmatpush1.msra.mxu0 0.0
    %151 = vmatprep.subr.mxu0 0.0
    %152 = vmatpush1.msra.mxu0 0.0
    %153 = vmatprep.subr.mxu0 0.0
    %154 = vmatpush1.msra.mxu0 0.0
    %155 = vmatprep.subr.mxu0 0.0
    %156 = vmatpush1.msra.mxu0 0.0
    %157 = vmatprep.subr.mxu0 0.0
    %158 = vmatpush1.msra.mxu0 0.0
    %159 = vmatprep.subr.mxu0 0.0
    %160 = vmatpush1.msra.mxu0 0.0
    %161 = vmatprep.subr.mxu0 %v93
    %162 = vmatpush1.msra.mxu0 %v92
    %163 = vmatprep.subr.mxu0 0.0
    %164 = vmatpush2.msra.mxu0 0.0
    %165 = vmatprep.subr.mxu0 0.0
    %166 = vmatpush2.msra.mxu0 0.0
    %167 = vmatprep.subr.mxu0 0.0
    %168 = vmatpush2.msra.mxu0 0.0
    %169 = vmatprep.subr.mxu0 0.0
    %170 = vmatpush2.msra.mxu0 0.0
    %171 = vmatprep.subr.mxu0 0.0
    %172 = vmatpush2.msra.mxu0 0.0
    %173 = vmatprep.subr.mxu0 0.0
    %174 = vmatpush2.msra.mxu0 0.0
    %175 = vmatprep.subr.mxu0 0.0
    %176 = vmatpush2.msra.mxu0 0.0
    %177 = vmatprep.subr.mxu0 0.0
    %178 = vmatpush2.msra.mxu0 0.0
    %179 = vmatprep.subr.mxu0 0.0
    %180 = vmatpush2.msra.mxu0 0.0
    %181 = vmatprep.subr.mxu0 0.0
    %182 = vmatpush2.msra.mxu0 0.0
    %183 = vmatprep.subr.mxu0 0.0
    %184 = vmatpush2.msra.mxu0 0.0
    %185 = vmatprep.subr.mxu0 0.0
    %186 = vmatpush2.msra.mxu0 0.0
    %187 = vmatprep.subr.mxu0 0.0
    %188 = vmatpush2.msra.mxu0 0.0
    %189 = vmatprep.subr.mxu0 0.0
    %190 = vmatpush2.msra.mxu0 0.0
    %191 = vmatprep.subr.mxu0 0.0
    %192 = vmatpush2.msra.mxu0 0.0
    %193 = vmatprep.subr.mxu0 0.0
    %194 = vmatpush2.msra.mxu0 0.0
    %195 = vmatprep.mubr.f32.mxu0 0.0
    %196 = vmatmul.mubr.f32.gmra.mxu0 %v108
    %v197 = vpop.f32.mrf.mxu0
    %v198 = vadd.f32 %v99, %v197
    %v199 = vpop.f32.mrf.mxu0
    %v200 = vadd.f32 %v103, %v199
    %201 = vmatprep.mubr.f32.mxu0 0.0
    %202 = vmatmul.mubr.f32.gmra.mxu0 %v111
    %v203 = vpop.f32.mrf.mxu0
    %v204 = vadd.f32 %v99, %v203
    %v205 = vpop.f32.mrf.mxu0
    %v206 = vadd.f32 %v103, %v205
    %207 = vmatprep.mubr.f32.mxu0 0.0
    %208 = vmatmul.mubr.f32.gmra.mxu0 %v114
    %v209 = vpop.f32.mrf.mxu0
    %v210 = vadd.f32 %v99, %v209
    %v211 = vpop.f32.mrf.mxu0
    %v212 = vadd.f32 %v103, %v211
    %213 = vmatprep.mubr.f32.mxu0 0.0
    %214 = vmatmul.mubr.f32.gmra.mxu0 %v117
    %v215 = vpop.f32.mrf.mxu0
    %v216 = vadd.f32 %v99, %v215
    %v217 = vpop.f32.mrf.mxu0
    %v218 = vadd.f32 %v103, %v217
    %219 = vmatprep.mubr.f32.mxu0 0.0
    %220 = vmatmul.mubr.f32.gmra.mxu0 %v120
    %v221 = vpop.f32.mrf.mxu0
    %v222 = vadd.f32 %v99, %v221
    %v223 = vpop.f32.mrf.mxu0
    %v224 = vadd.f32 %v103, %v223
    %225 = vmatprep.mubr.f32.mxu0 0.0
    %226 = vmatmul.mubr.f32.gmra.mxu0 %v123
    %v227 = vpop.f32.mrf.mxu0
    %v228 = vadd.f32 %v99, %v227
    %v229 = vpop.f32.mrf.mxu0
    %v230 = vadd.f32 %v103, %v229
    %231 = vmatprep.mubr.f32.mxu0 0.0
    %232 = vmatmul.mubr.f32.gmra.mxu0 %v126
    %v233 = vpop.f32.mrf.mxu0
    %v234 = vadd.f32 %v99, %v233
    %v235 = vpop.f32.mrf.mxu0
    %v236 = vadd.f32 %v103, %v235
    %237 = vmatprep.mubr.f32.mxu0 0.0
    %238 = vmatmul.mubr.f32.gmra.mxu0 %v129
    %v239 = vpop.f32.mrf.mxu0
    %v240 = vadd.f32 %v99, %v239
    %v241 = vpop.f32.mrf.mxu0
    %v242 = vadd.f32 %v103, %v241
    %243 = vdwg.mxu0
    %244 = vst [vmem:[#allocation2] sm:$0xff] %v198
    %245 = vst [vmem:[#allocation2 + $0x8] sm:$0xff] %v200
    %246 = vst [vmem:[#allocation2 + $0x10] sm:$0xff] %v204
    %247 = vst [vmem:[#allocation2 + $0x18] sm:$0xff] %v206
    %248 = vst [vmem:[#allocation2 + $0x20] sm:$0xff] %v210
    %249 = vst [vmem:[#allocation2 + $0x28] sm:$0xff] %v212
    %250 = vst [vmem:[#allocation2 + $0x30] sm:$0xff] %v216
    %251 = vst [vmem:[#allocation2 + $0x38] sm:$0xff] %v218
    %252 = vst [vmem:[#allocation2 + $0x40] sm:$0xff] %v222
    %253 = vst [vmem:[#allocation2 + $0x48] sm:$0xff] %v224
    %254 = vst [vmem:[#allocation2 + $0x50] sm:$0xff] %v228
    %255 = vst [vmem:[#allocation2 + $0x58] sm:$0xff] %v230
    %256 = vst [vmem:[#allocation2 + $0x60] sm:$0xff] %v234
    %257 = vst [vmem:[#allocation2 + $0x68] sm:$0xff] %v236
    %258 = vst [vmem:[#allocation2 + $0x70] sm:$0xff] %v240
    %259 = vst [vmem:[#allocation2 + $0x78] sm:$0xff] %v242
    %v260 = vld [vmem:[%s5] sm:$0x3]
    %v262 = vlaneseq
    %v263 = vshrl.u32 %v262, 7
    %v264 = vsub.s32 0, %v263
    %v265 = vrot.slane %v260, %v264
    %v266 = vlaneseq
    %v267 = vshrl.u32 %v266, 7
    %v268 = vsub.s32 1, %v267
    %v269 = vrot.slane %v260, %v268
    %v272 = vld [vmem:[#allocation8] sm:$0xff]
    %v273 = vld [vmem:[#allocation8 + $0x8] sm:$0xff]
    %v274 = vld [vmem:[#allocation8 + $0x10] sm:$0xff]
    %v275 = vld [vmem:[#allocation8 + $0x18] sm:$0xff]
    %v276 = vld [vmem:[#allocation8 + $0x20] sm:$0xff]
    %v277 = vld [vmem:[#allocation8 + $0x28] sm:$0xff]
    %v278 = vld [vmem:[#allocation8 + $0x30] sm:$0xff]
    %v279 = vld [vmem:[#allocation8 + $0x38] sm:$0xff]
    %v280 = vld [vmem:[#allocation8 + $0x40] sm:$0xff]
    %v281 = vld [vmem:[#allocation8 + $0x48] sm:$0xff]
    %v282 = vld [vmem:[#allocation8 + $0x50] sm:$0xff]
    %v283 = vld [vmem:[#allocation8 + $0x58] sm:$0xff]
    %v284 = vld [vmem:[#allocation8 + $0x60] sm:$0xff]
    %v285 = vld [vmem:[#allocation8 + $0x68] sm:$0xff]
    %v286 = vld [vmem:[#allocation8 + $0x70] sm:$0xff]
    %v287 = vld [vmem:[#allocation8 + $0x78] sm:$0xff]
    %v288 = vld [vmem:[#allocation9] sm:$0xff]
    %v289 = vld [vmem:[#allocation9 + $0x8] sm:$0xff]
    %v290 = vld [vmem:[#allocation9 + $0x10] sm:$0xff]
    %v291 = vld [vmem:[#allocation9 + $0x18] sm:$0xff]
    %v292 = vld [vmem:[#allocation9 + $0x20] sm:$0xff]
    %v293 = vld [vmem:[#allocation9 + $0x28] sm:$0xff]
    %v294 = vld [vmem:[#allocation9 + $0x30] sm:$0xff]
    %v295 = vld [vmem:[#allocation9 + $0x38] sm:$0xff]
    %v296 = vld [vmem:[#allocation9 + $0x40] sm:$0xff]
    %v297 = vld [vmem:[#allocation9 + $0x48] sm:$0xff]
    %v298 = vld [vmem:[#allocation9 + $0x50] sm:$0xff]
    %v299 = vld [vmem:[#allocation9 + $0x58] sm:$0xff]
    %v300 = vld [vmem:[#allocation9 + $0x60] sm:$0xff]
    %v301 = vld [vmem:[#allocation9 + $0x68] sm:$0xff]
    %v302 = vld [vmem:[#allocation9 + $0x70] sm:$0xff]
    %v303 = vld [vmem:[#allocation9 + $0x78] sm:$0xff]
    %v304 = vld [vmem:[#allocation9 + $0x80] sm:$0xff]
    %v305 = vld [vmem:[#allocation9 + $0x88] sm:$0xff]
    %v306 = vld [vmem:[#allocation9 + $0x90] sm:$0xff]
    %v307 = vld [vmem:[#allocation9 + $0x98] sm:$0xff]
    %v308 = vld [vmem:[#allocation9 + $0xa0] sm:$0xff]
    %v309 = vld [vmem:[#allocation9 + $0xa8] sm:$0xff]
    %v310 = vld [vmem:[#allocation9 + $0xb0] sm:$0xff]
    %v311 = vld [vmem:[#allocation9 + $0xb8] sm:$0xff]
    %v312 = vld [vmem:[#allocation9 + $0xc0] sm:$0xff]
    %v313 = vld [vmem:[#allocation9 + $0xc8] sm:$0xff]
    %v314 = vld [vmem:[#allocation9 + $0xd0] sm:$0xff]
    %v315 = vld [vmem:[#allocation9 + $0xd8] sm:$0xff]
    %v316 = vld [vmem:[#allocation9 + $0xe0] sm:$0xff]
    %v317 = vld [vmem:[#allocation9 + $0xe8] sm:$0xff]
    %v318 = vld [vmem:[#allocation9 + $0xf0] sm:$0xff]
    %v319 = vld [vmem:[#allocation9 + $0xf8] sm:$0xff]
    %v320 = vld [vmem:[#allocation2] sm:$0xff]
    %v321 = vld [vmem:[#allocation2 + $0x8] sm:$0xff]
    %vm322 = vcmask 523264
    %v324 = vsel %vm322, 0.0, 0
    %326 = vmatprep.subr.mxu0 0.0
    %327 = vmatpush1.msra.mxu0 0.0
    %328 = vmatprep.subr.mxu0 0.0
    %329 = vmatpush1.msra.mxu0 0.0
    %330 = vmatprep.subr.mxu0 0.0
    %331 = vmatpush1.msra.mxu0 0.0
    %332 = vmatprep.subr.mxu0 0.0
    %333 = vmatpush1.msra.mxu0 0.0
    %334 = vmatprep.subr.mxu0 0.0
    %335 = vmatpush1.msra.mxu0 0.0
    %336 = vmatprep.subr.mxu0 0.0
    %337 = vmatpush1.msra.mxu0 0.0
    %338 = vmatprep.subr.mxu0 0.0
    %339 = vmatpush1.msra.mxu0 0.0
    %340 = vmatprep.subr.mxu0 0.0
    %341 = vmatpush1.msra.mxu0 0.0
    %342 = vmatprep.subr.mxu0 %v287
    %343 = vmatpush1.msra.mxu0 %v286
    %344 = vmatprep.subr.mxu0 %v285
    %345 = vmatpush1.msra.mxu0 %v284
    %346 = vmatprep.subr.mxu0 %v283
    %347 = vmatpush1.msra.mxu0 %v282
    %348 = vmatprep.subr.mxu0 %v281
    %349 = vmatpush1.msra.mxu0 %v280
    %350 = vmatprep.subr.mxu0 %v279
    %351 = vmatpush1.msra.mxu0 %v278
    %352 = vmatprep.subr.mxu0 %v277
    %353 = vmatpush1.msra.mxu0 %v276
    %354 = vmatprep.subr.mxu0 %v275
    %355 = vmatpush1.msra.mxu0 %v274
    %356 = vmatprep.subr.mxu0 %v273
    %357 = vmatpush1.msra.mxu0 %v272
    %358 = vmatprep.subr.mxu0 0.0
    %359 = vmatpush2.msra.mxu0 0.0
    %360 = vmatprep.subr.mxu0 0.0
    %361 = vmatpush2.msra.mxu0 0.0
    %362 = vmatprep.subr.mxu0 0.0
    %363 = vmatpush2.msra.mxu0 0.0
    %364 = vmatprep.subr.mxu0 0.0
    %365 = vmatpush2.msra.mxu0 0.0
    %366 = vmatprep.subr.mxu0 0.0
    %367 = vmatpush2.msra.mxu0 0.0
    %368 = vmatprep.subr.mxu0 0.0
    %369 = vmatpush2.msra.mxu0 0.0
    %370 = vmatprep.subr.mxu0 0.0
    %371 = vmatpush2.msra.mxu0 0.0
    %372 = vmatprep.subr.mxu0 0.0
    %373 = vmatpush2.msra.mxu0 0.0
    %374 = vmatprep.subr.mxu0 0.0
    %375 = vmatpush2.msra.mxu0 0.0
    %376 = vmatprep.subr.mxu0 0.0
    %377 = vmatpush2.msra.mxu0 0.0
    %378 = vmatprep.subr.mxu0 0.0
    %379 = vmatpush2.msra.mxu0 0.0
    %380 = vmatprep.subr.mxu0 0.0
    %381 = vmatpush2.msra.mxu0 0.0
    %382 = vmatprep.subr.mxu0 0.0
    %383 = vmatpush2.msra.mxu0 0.0
    %384 = vmatprep.subr.mxu0 0.0
    %385 = vmatpush2.msra.mxu0 0.0
    %386 = vmatprep.subr.mxu0 0.0
    %387 = vmatpush2.msra.mxu0 0.0
    %388 = vmatprep.subr.mxu0 0.0
    %389 = vmatpush2.msra.mxu0 0.0
    %390 = vmatprep.mubr.f32.mxu0 0.0
    %391 = vmatmul.mubr.f32.gmra.mxu0 %v324
    %v392 = vpop.f32.mrf.mxu0
    %v393 = vadd.f32 0.0, %v392
    %v394 = vpop.f32.mrf.mxu0
    %v395 = vadd.f32 0.0, %v394
    %396 = vdwg.mxu0
    %v397 = vadd.f32 %v320, %v393
    %v398 = vadd.f32 %v321, %v395
    %v399 = vxor.u32 %v397, 2147483648
    %v400 = vxor.u32 %v398, 2147483648
    %v401 = vmul.f32 %v399, 1.442695
    %v402 = vpow.pop %v401
    %v403 = vmul.f32 %v400, 1.442695
    %v404 = vpow.pop %v403
    %v405 = vadd.f32 %v402, 1.0
    %v406 = vadd.f32 %v404, 1.0
    %v407 = vrcp.pop %v405
    %v408 = vmul.f32 1.0, %v407
    %v409 = vrcp.pop %v406
    %v410 = vmul.f32 1.0, %v409
    %v411 = vtanh.pop %v398
    %v412 = vmul.f32 %v408, 0.0
    %414 = vrot.lane.b32.xlu0 %v411, 64
    %v415 = vpop.permute.xlu0 %414
    %v417 = vmul.f32 %v408, %v415
    %419 = vrot.lane.b32.xlu0 %v417, 64
    %v420 = vpop.permute.xlu0 %419
    %v422 = vadd.f32 %v412, %v420
    %v423 = vtanh.pop %v422
    %425 = vrot.lane.b32.xlu0 %v423, 64
    %v426 = vpop.permute.xlu0 %425
    %v428 = vmul.f32 %v410, %v426
    %v429 = vsel %vm322, %v428, 0.0
    %430 = vmatprep.subr.mxu0 %v319
    %431 = vmatpush1.msra.mxu0 %v318
    %432 = vmatprep.subr.mxu0 %v317
    %433 = vmatpush1.msra.mxu0 %v316
    %434 = vmatprep.subr.mxu0 %v315
    %435 = vmatpush1.msra.mxu0 %v314
    %436 = vmatprep.subr.mxu0 %v313
    %437 = vmatpush1.msra.mxu0 %v312
    %438 = vmatprep.subr.mxu0 %v311
    %439 = vmatpush1.msra.mxu0 %v310
    %440 = vmatprep.subr.mxu0 %v309
    %441 = vmatpush1.msra.mxu0 %v308
    %442 = vmatprep.subr.mxu0 %v307
    %443 = vmatpush1.msra.mxu0 %v306
    %444 = vmatprep.subr.mxu0 %v305
    %445 = vmatpush1.msra.mxu0 %v304
    %446 = vmatprep.subr.mxu0 %v303
    %447 = vmatpush1.msra.mxu0 %v302
    %448 = vmatprep.subr.mxu0 %v301
    %449 = vmatpush1.msra.mxu0 %v300
    %450 = vmatprep.subr.mxu0 %v299
    %451 = vmatpush1.msra.mxu0 %v298
    %452 = vmatprep.subr.mxu0 %v297
    %453 = vmatpush1.msra.mxu0 %v296
    %454 = vmatprep.subr.mxu0 %v295
    %455 = vmatpush1.msra.mxu0 %v294
    %456 = vmatprep.subr.mxu0 %v293
    %457 = vmatpush1.msra.mxu0 %v292
    %458 = vmatprep.subr.mxu0 %v291
    %459 = vmatpush1.msra.mxu0 %v290
    %460 = vmatprep.subr.mxu0 %v289
    %461 = vmatpush1.msra.mxu0 %v288
    %462 = vmatprep.subr.mxu0 0.0
    %463 = vmatpush2.msra.mxu0 0.0
    %464 = vmatprep.subr.mxu0 0.0
    %465 = vmatpush2.msra.mxu0 0.0
    %466 = vmatprep.subr.mxu0 0.0
    %467 = vmatpush2.msra.mxu0 0.0
    %468 = vmatprep.subr.mxu0 0.0
    %469 = vmatpush2.msra.mxu0 0.0
    %470 = vmatprep.subr.mxu0 0.0
    %471 = vmatpush2.msra.mxu0 0.0
    %472 = vmatprep.subr.mxu0 0.0
    %473 = vmatpush2.msra.mxu0 0.0
    %474 = vmatprep.subr.mxu0 0.0
    %475 = vmatpush2.msra.mxu0 0.0
    %476 = vmatprep.subr.mxu0 0.0
    %477 = vmatpush2.msra.mxu0 0.0
    %478 = vmatprep.subr.mxu0 0.0
    %479 = vmatpush2.msra.mxu0 0.0
    %480 = vmatprep.subr.mxu0 0.0
    %481 = vmatpush2.msra.mxu0 0.0
    %482 = vmatprep.subr.mxu0 0.0
    %483 = vmatpush2.msra.mxu0 0.0
    %484 = vmatprep.subr.mxu0 0.0
    %485 = vmatpush2.msra.mxu0 0.0
    %486 = vmatprep.subr.mxu0 0.0
    %487 = vmatpush2.msra.mxu0 0.0
    %488 = vmatprep.subr.mxu0 0.0
    %489 = vmatpush2.msra.mxu0 0.0
    %490 = vmatprep.subr.mxu0 0.0
    %491 = vmatpush2.msra.mxu0 0.0
    %492 = vmatprep.subr.mxu0 0.0
    %493 = vmatpush2.msra.mxu0 0.0
    %494 = vmatprep.mubr.f32.mxu0 0.0
    %495 = vmatmul.mubr.f32.gmra.mxu0 %v429
    %v496 = vpop.f32.mrf.mxu0
    %v497 = vadd.f32 %v265, %v496
    %v498 = vpop.f32.mrf.mxu0
    %v499 = vadd.f32 %v269, %v498
    %500 = vdwg.mxu0
    %v501 = vxor.u32 %v497, 2147483648
    %v502 = vxor.u32 %v499, 2147483648
    %v503 = vmul.f32 %v501, 1.442695
    %v504 = vpow.pop %v503
    %v505 = vmul.f32 %v502, 1.442695
    %v506 = vpow.pop %v505
    %v507 = vadd.f32 %v504, 1.0
    %v508 = vadd.f32 %v506, 1.0
    %v509 = vrcp.pop %v507
    %v510 = vmul.f32 1.0, %v509
    %v511 = vrcp.pop %v508
    %v512 = vmul.f32 1.0, %v511
    %v513 = vtanh.pop %v499
    %v514 = vmul.f32 %v510, 0.0
    %516 = vrot.lane.b32.xlu0 %v513, 64
    %v517 = vpop.permute.xlu0 %516
    %v519 = vmul.f32 %v510, %v517
    %521 = vrot.lane.b32.xlu0 %v519, 64
    %v522 = vpop.permute.xlu0 %521
    %v524 = vadd.f32 %v514, %v522
    %v525 = vtanh.pop %v524
    %527 = vrot.lane.b32.xlu0 %v525, 64
    %v528 = vpop.permute.xlu0 %527
    %v530 = vmul.f32 %v512, %v528
    %s531 = scalar_lea.vmem [#allocation2], 16
    %v532 = vld [vmem:[%s531] sm:$0xff]
    %v533 = vld [vmem:[%s531 + $0x8] sm:$0xff]
    %v535 = vsel %vm322, %v428, 0
    %537 = vmatprep.subr.mxu0 0.0
    %538 = vmatpush1.msra.mxu0 0.0
    %539 = vmatprep.subr.mxu0 0.0
    %540 = vmatpush1.msra.mxu0 0.0
    %541 = vmatprep.subr.mxu0 0.0
    %542 = vmatpush1.msra.mxu0 0.0
    %543 = vmatprep.subr.mxu0 0.0
    %544 = vmatpush1.msra.mxu0 0.0
    %545 = vmatprep.subr.mxu0 0.0
    %546 = vmatpush1.msra.mxu0 0.0
    %547 = vmatprep.subr.mxu0 0.0
    %548 = vmatpush1.msra.mxu0 0.0
    %549 = vmatprep.subr.mxu0 0.0
    %550 = vmatpush1.msra.mxu0 0.0
    %551 = vmatprep.subr.mxu0 0.0
    %552 = vmatpush1.msra.mxu0 0.0
    %553 = vmatprep.subr.mxu0 %v287
    %554 = vmatpush1.msra.mxu0 %v286
    %555 = vmatprep.subr.mxu0 %v285
    %556 = vmatpush1.msra.mxu0 %v284
    %557 = vmatprep.subr.mxu0 %v283
    %558 = vmatpush1.msra.mxu0 %v282
    %559 = vmatprep.subr.mxu0 %v281
    %560 = vmatpush1.msra.mxu0 %v280
    %561 = vmatprep.subr.mxu0 %v279
    %562 = vmatpush1.msra.mxu0 %v278
    %563 = vmatprep.subr.mxu0 %v277
    %564 = vmatpush1.msra.mxu0 %v276
    %565 = vmatprep.subr.mxu0 %v275
    %566 = vmatpush1.msra.mxu0 %v274
    %567 = vmatprep.subr.mxu0 %v273
    %568 = vmatpush1.msra.mxu0 %v272
    %569 = vmatprep.subr.mxu0 0.0
    %570 = vmatpush2.msra.mxu0 0.0
    %571 = vmatprep.subr.mxu0 0.0
    %572 = vmatpush2.msra.mxu0 0.0
    %573 = vmatprep.subr.mxu0 0.0
    %574 = vmatpush2.msra.mxu0 0.0
    %575 = vmatprep.subr.mxu0 0.0
    %576 = vmatpush2.msra.mxu0 0.0
    %577 = vmatprep.subr.mxu0 0.0
    %578 = vmatpush2.msra.mxu0 0.0
    %579 = vmatprep.subr.mxu0 0.0
    %580 = vmatpush2.msra.mxu0 0.0
    %581 = vmatprep.subr.mxu0 0.0
    %582 = vmatpush2.msra.mxu0 0.0
    %583 = vmatprep.subr.mxu0 0.0
    %584 = vmatpush2.msra.mxu0 0.0
    %585 = vmatprep.subr.mxu0 0.0
    %586 = vmatpush2.msra.mxu0 0.0
    %587 = vmatprep.subr.mxu0 0.0
    %588 = vmatpush2.msra.mxu0 0.0
    %589 = vmatprep.subr.mxu0 0.0
    %590 = vmatpush2.msra.mxu0 0.0
    %591 = vmatprep.subr.mxu0 0.0
    %592 = vmatpush2.msra.mxu0 0.0
    %593 = vmatprep.subr.mxu0 0.0
    %594 = vmatpush2.msra.mxu0 0.0
    %595 = vmatprep.subr.mxu0 0.0
    %596 = vmatpush2.msra.mxu0 0.0
    %597 = vmatprep.subr.mxu0 0.0
    %598 = vmatpush2.msra.mxu0 0.0
    %599 = vmatprep.subr.mxu0 0.0
    %600 = vmatpush2.msra.mxu0 0.0
    %601 = vmatprep.mubr.f32.mxu0 0.0
    %602 = vmatmul.mubr.f32.gmra.mxu0 %v535
    %v603 = vpop.f32.mrf.mxu0
    %v604 = vadd.f32 0.0, %v603
    %v605 = vpop.f32.mrf.mxu0
    %v606 = vadd.f32 0.0, %v605
    %607 = vdwg.mxu0
    %v608 = vadd.f32 %v532, %v604
    %v609 = vadd.f32 %v533, %v606
    %v610 = vxor.u32 %v608, 2147483648
    %v611 = vxor.u32 %v609, 2147483648
    %v612 = vmul.f32 %v610, 1.442695
    %v613 = vpow.pop %v612
    %v614 = vmul.f32 %v611, 1.442695
    %v615 = vpow.pop %v614
    %v616 = vadd.f32 %v613, 1.0
    %v617 = vadd.f32 %v615, 1.0
    %v618 = vrcp.pop %v616
    %v619 = vmul.f32 1.0, %v618
    %v620 = vrcp.pop %v617
    %v621 = vmul.f32 1.0, %v620
    %v622 = vtanh.pop %v609
    %v623 = vmul.f32 %v619, %v422
    %625 = vrot.lane.b32.xlu0 %v622, 64
    %v626 = vpop.permute.xlu0 %625
    %v628 = vmul.f32 %v619, %v626
    %630 = vrot.lane.b32.xlu0 %v628, 64
    %v631 = vpop.permute.xlu0 %630
    %v633 = vadd.f32 %v623, %v631
    %v634 = vtanh.pop %v633
    %636 = vrot.lane.b32.xlu0 %v634, 64
    %v637 = vpop.permute.xlu0 %636
    %v639 = vmul.f32 %v621, %v637
    %641 = vrot.lane.b32.xlu0 %v530, 64
    %v642 = vpop.permute.xlu0 %641
    %v644 = vsel %vm322, %v639, %v642
    %645 = vmatprep.subr.mxu0 %v319
    %646 = vmatpush1.msra.mxu0 %v318
    %647 = vmatprep.subr.mxu0 %v317
    %648 = vmatpush1.msra.mxu0 %v316
    %649 = vmatprep.subr.mxu0 %v315
    %650 = vmatpush1.msra.mxu0 %v314
    %651 = vmatprep.subr.mxu0 %v313
    %652 = vmatpush1.msra.mxu0 %v312
    %653 = vmatprep.subr.mxu0 %v311
    %654 = vmatpush1.msra.mxu0 %v310
    %655 = vmatprep.subr.mxu0 %v309
    %656 = vmatpush1.msra.mxu0 %v308
    %657 = vmatprep.subr.mxu0 %v307
    %658 = vmatpush1.msra.mxu0 %v306
    %659 = vmatprep.subr.mxu0 %v305
    %660 = vmatpush1.msra.mxu0 %v304
    %661 = vmatprep.subr.mxu0 %v303
    %662 = vmatpush1.msra.mxu0 %v302
    %663 = vmatprep.subr.mxu0 %v301
    %664 = vmatpush1.msra.mxu0 %v300
    %665 = vmatprep.subr.mxu0 %v299
    %666 = vmatpush1.msra.mxu0 %v298
    %667 = vmatprep.subr.mxu0 %v297
    %668 = vmatpush1.msra.mxu0 %v296
    %669 = vmatprep.subr.mxu0 %v295
    %670 = vmatpush1.msra.mxu0 %v294
    %671 = vmatprep.subr.mxu0 %v293
    %672 = vmatpush1.msra.mxu0 %v292
    %673 = vmatprep.subr.mxu0 %v291
    %674 = vmatpush1.msra.mxu0 %v290
    %675 = vmatprep.subr.mxu0 %v289
    %676 = vmatpush1.msra.mxu0 %v288
    %677 = vmatprep.subr.mxu0 0.0
    %678 = vmatpush2.msra.mxu0 0.0
    %679 = vmatprep.subr.mxu0 0.0
    %680 = vmatpush2.msra.mxu0 0.0
    %681 = vmatprep.subr.mxu0 0.0
    %682 = vmatpush2.msra.mxu0 0.0
    %683 = vmatprep.subr.mxu0 0.0
    %684 = vmatpush2.msra.mxu0 0.0
    %685 = vmatprep.subr.mxu0 0.0
    %686 = vmatpush2.msra.mxu0 0.0
    %687 = vmatprep.subr.mxu0 0.0
    %688 = vmatpush2.msra.mxu0 0.0
    %689 = vmatprep.subr.mxu0 0.0
    %690 = vmatpush2.msra.mxu0 0.0
    %691 = vmatprep.subr.mxu0 0.0
    %692 = vmatpush2.msra.mxu0 0.0
    %693 = vmatprep.subr.mxu0 0.0
    %694 = vmatpush2.msra.mxu0 0.0
    %695 = vmatprep.subr.mxu0 0.0
    %696 = vmatpush2.msra.mxu0 0.0
    %697 = vmatprep.subr.mxu0 0.0
    %698 = vmatpush2.msra.mxu0 0.0
    %699 = vmatprep.subr.mxu0 0.0
    %700 = vmatpush2.msra.mxu0 0.0
    %701 = vmatprep.subr.mxu0 0.0
    %702 = vmatpush2.msra.mxu0 0.0
    %703 = vmatprep.subr.mxu0 0.0
    %704 = vmatpush2.msra.mxu0 0.0
    %705 = vmatprep.subr.mxu0 0.0
    %706 = vmatpush2.msra.mxu0 0.0
    %707 = vmatprep.subr.mxu0 0.0
    %708 = vmatpush2.msra.mxu0 0.0
    %709 = vmatprep.mubr.f32.mxu0 0.0
    %710 = vmatmul.mubr.f32.gmra.mxu0 %v644
    %v711 = vpop.f32.mrf.mxu0
    %v712 = vadd.f32 %v265, %v711
    %v713 = vpop.f32.mrf.mxu0
    %v714 = vadd.f32 %v269, %v713
    %715 = vdwg.mxu0
    %v716 = vxor.u32 %v712, 2147483648
    %v717 = vxor.u32 %v714, 2147483648
    %v718 = vmul.f32 %v716, 1.442695
    %v719 = vpow.pop %v718
    %v720 = vmul.f32 %v717, 1.442695
    %v721 = vpow.pop %v720
    %v722 = vadd.f32 %v719, 1.0
    %v723 = vadd.f32 %v721, 1.0
    %v724 = vrcp.pop %v722
    %v725 = vmul.f32 1.0, %v724
    %v726 = vrcp.pop %v723
    %v727 = vmul.f32 1.0, %v726
    %v728 = vtanh.pop %v714
    %v729 = vmul.f32 %v725, %v524
    %731 = vrot.lane.b32.xlu0 %v728, 64
    %v732 = vpop.permute.xlu0 %731
    %v734 = vmul.f32 %v725, %v732
    %736 = vrot.lane.b32.xlu0 %v734, 64
    %v737 = vpop.permute.xlu0 %736
    %v739 = vadd.f32 %v729, %v737
    %v740 = vtanh.pop %v739
    %742 = vrot.lane.b32.xlu0 %v740, 64
    %v743 = vpop.permute.xlu0 %742
    %v745 = vmul.f32 %v727, %v743
    %s746 = scalar_lea.vmem [#allocation2], 32
    %v747 = vld [vmem:[%s746] sm:$0xff]
    %v748 = vld [vmem:[%s746 + $0x8] sm:$0xff]
    %v750 = vsel %vm322, %v639, 0
    %752 = vmatprep.subr.mxu0 0.0
    %753 = vmatpush1.msra.mxu0 0.0
    %754 = vmatprep.subr.mxu0 0.0
    %755 = vmatpush1.msra.mxu0 0.0
    %756 = vmatprep.subr.mxu0 0.0
    %757 = vmatpush1.msra.mxu0 0.0
    %758 = vmatprep.subr.mxu0 0.0
    %759 = vmatpush1.msra.mxu0 0.0
    %760 = vmatprep.subr.mxu0 0.0
    %761 = vmatpush1.msra.mxu0 0.0
    %762 = vmatprep.subr.mxu0 0.0
    %763 = vmatpush1.msra.mxu0 0.0
    %764 = vmatprep.subr.mxu0 0.0
    %765 = vmatpush1.msra.mxu0 0.0
    %766 = vmatprep.subr.mxu0 0.0
    %767 = vmatpush1.msra.mxu0 0.0
    %768 = vmatprep.subr.mxu0 %v287
    %769 = vmatpush1.msra.mxu0 %v286
    %770 = vmatprep.subr.mxu0 %v285
    %771 = vmatpush1.msra.mxu0 %v284
    %772 = vmatprep.subr.mxu0 %v283
    %773 = vmatpush1.msra.mxu0 %v282
    %774 = vmatprep.subr.mxu0 %v281
    %775 = vmatpush1.msra.mxu0 %v280
    %776 = vmatprep.subr.mxu0 %v279
    %777 = vmatpush1.msra.mxu0 %v278
    %778 = vmatprep.subr.mxu0 %v277
    %779 = vmatpush1.msra.mxu0 %v276
    %780 = vmatprep.subr.mxu0 %v275
    %781 = vmatpush1.msra.mxu0 %v274
    %782 = vmatprep.subr.mxu0 %v273
    %783 = vmatpush1.msra.mxu0 %v272
    %784 = vmatprep.subr.mxu0 0.0
    %785 = vmatpush2.msra.mxu0 0.0
    %786 = vmatprep.subr.mxu0 0.0
    %787 = vmatpush2.msra.mxu0 0.0
    %788 = vmatprep.subr.mxu0 0.0
    %789 = vmatpush2.msra.mxu0 0.0
    %790 = vmatprep.subr.mxu0 0.0
    %791 = vmatpush2.msra.mxu0 0.0
    %792 = vmatprep.subr.mxu0 0.0
    %793 = vmatpush2.msra.mxu0 0.0
    %794 = vmatprep.subr.mxu0 0.0
    %795 = vmatpush2.msra.mxu0 0.0
    %796 = vmatprep.subr.mxu0 0.0
    %797 = vmatpush2.msra.mxu0 0.0
    %798 = vmatprep.subr.mxu0 0.0
    %799 = vmatpush2.msra.mxu0 0.0
    %800 = vmatprep.subr.mxu0 0.0
    %801 = vmatpush2.msra.mxu0 0.0
    %802 = vmatprep.subr.mxu0 0.0
    %803 = vmatpush2.msra.mxu0 0.0
    %804 = vmatprep.subr.mxu0 0.0
    %805 = vmatpush2.msra.mxu0 0.0
    %806 = vmatprep.subr.mxu0 0.0
    %807 = vmatpush2.msra.mxu0 0.0
    %808 = vmatprep.subr.mxu0 0.0
    %809 = vmatpush2.msra.mxu0 0.0
    %810 = vmatprep.subr.mxu0 0.0
    %811 = vmatpush2.msra.mxu0 0.0
    %812 = vmatprep.subr.mxu0 0.0
    %813 = vmatpush2.msra.mxu0 0.0
    %814 = vmatprep.subr.mxu0 0.0
    %815 = vmatpush2.msra.mxu0 0.0
    %816 = vmatprep.mubr.f32.mxu0 0.0
    %817 = vmatmul.mubr.f32.gmra.mxu0 %v750
    %v818 = vpop.f32.mrf.mxu0
    %v819 = vadd.f32 0.0, %v818
    %v820 = vpop.f32.mrf.mxu0
    %v821 = vadd.f32 0.0, %v820
    %822 = vdwg.mxu0
    %v823 = vadd.f32 %v747, %v819
    %v824 = vadd.f32 %v748, %v821
    %v825 = vxor.u32 %v823, 2147483648
    %v826 = vxor.u32 %v824, 2147483648
    %v827 = vmul.f32 %v825, 1.442695
    %v828 = vpow.pop %v827
    %v829 = vmul.f32 %v826, 1.442695
    %v830 = vpow.pop %v829
    %v831 = vadd.f32 %v828, 1.0
    %v832 = vadd.f32 %v830, 1.0
    %v833 = vrcp.pop %v831
    %v834 = vmul.f32 1.0, %v833
    %v835 = vrcp.pop %v832
    %v836 = vmul.f32 1.0, %v835
    %v837 = vtanh.pop %v824
    %v838 = vmul.f32 %v834, %v633
    %840 = vrot.lane.b32.xlu0 %v837, 64
    %v841 = vpop.permute.xlu0 %840
    %v843 = vmul.f32 %v834, %v841
    %845 = vrot.lane.b32.xlu0 %v843, 64
    %v846 = vpop.permute.xlu0 %845
    %v848 = vadd.f32 %v838, %v846
    %v849 = vtanh.pop %v848
    %851 = vrot.lane.b32.xlu0 %v849, 64
    %v852 = vpop.permute.xlu0 %851
    %v854 = vmul.f32 %v836, %v852
    %856 = vrot.lane.b32.xlu0 %v745, 64
    %v857 = vpop.permute.xlu0 %856
    %v859 = vsel %vm322, %v854, %v857
    %860 = vmatprep.subr.mxu0 %v319
    %861 = vmatpush1.msra.mxu0 %v318
    %862 = vmatprep.subr.mxu0 %v317
    %863 = vmatpush1.msra.mxu0 %v316
    %864 = vmatprep.subr.mxu0 %v315
    %865 = vmatpush1.msra.mxu0 %v314
    %866 = vmatprep.subr.mxu0 %v313
    %867 = vmatpush1.msra.mxu0 %v312
    %868 = vmatprep.subr.mxu0 %v311
    %869 = vmatpush1.msra.mxu0 %v310
    %870 = vmatprep.subr.mxu0 %v309
    %871 = vmatpush1.msra.mxu0 %v308
    %872 = vmatprep.subr.mxu0 %v307
    %873 = vmatpush1.msra.mxu0 %v306
    %874 = vmatprep.subr.mxu0 %v305
    %875 = vmatpush1.msra.mxu0 %v304
    %876 = vmatprep.subr.mxu0 %v303
    %877 = vmatpush1.msra.mxu0 %v302
    %878 = vmatprep.subr.mxu0 %v301
    %879 = vmatpush1.msra.mxu0 %v300
    %880 = vmatprep.subr.mxu0 %v299
    %881 = vmatpush1.msra.mxu0 %v298
    %882 = vmatprep.subr.mxu0 %v297
    %883 = vmatpush1.msra.mxu0 %v296
    %884 = vmatprep.subr.mxu0 %v295
    %885 = vmatpush1.msra.mxu0 %v294
    %886 = vmatprep.subr.mxu0 %v293
    %887 = vmatpush1.msra.mxu0 %v292
    %888 = vmatprep.subr.mxu0 %v291
    %889 = vmatpush1.msra.mxu0 %v290
    %890 = vmatprep.subr.mxu0 %v289
    %891 = vmatpush1.msra.mxu0 %v288
    %892 = vmatprep.subr.mxu0 0.0
    %893 = vmatpush2.msra.mxu0 0.0
    %894 = vmatprep.subr.mxu0 0.0
    %895 = vmatpush2.msra.mxu0 0.0
    %896 = vmatprep.subr.mxu0 0.0
    %897 = vmatpush2.msra.mxu0 0.0
    %898 = vmatprep.subr.mxu0 0.0
    %899 = vmatpush2.msra.mxu0 0.0
    %900 = vmatprep.subr.mxu0 0.0
    %901 = vmatpush2.msra.mxu0 0.0
    %902 = vmatprep.subr.mxu0 0.0
    %903 = vmatpush2.msra.mxu0 0.0
    %904 = vmatprep.subr.mxu0 0.0
    %905 = vmatpush2.msra.mxu0 0.0
    %906 = vmatprep.subr.mxu0 0.0
    %907 = vmatpush2.msra.mxu0 0.0
    %908 = vmatprep.subr.mxu0 0.0
    %909 = vmatpush2.msra.mxu0 0.0
    %910 = vmatprep.subr.mxu0 0.0
    %911 = vmatpush2.msra.mxu0 0.0
    %912 = vmatprep.subr.mxu0 0.0
    %913 = vmatpush2.msra.mxu0 0.0
    %914 = vmatprep.subr.mxu0 0.0
    %915 = vmatpush2.msra.mxu0 0.0
    %916 = vmatprep.subr.mxu0 0.0
    %917 = vmatpush2.msra.mxu0 0.0
    %918 = vmatprep.subr.mxu0 0.0
    %919 = vmatpush2.msra.mxu0 0.0
    %920 = vmatprep.subr.mxu0 0.0
    %921 = vmatpush2.msra.mxu0 0.0
    %922 = vmatprep.subr.mxu0 0.0
    %923 = vmatpush2.msra.mxu0 0.0
    %924 = vmatprep.mubr.f32.mxu0 0.0
    %925 = vmatmul.mubr.f32.gmra.mxu0 %v859
    %v926 = vpop.f32.mrf.mxu0
    %v927 = vadd.f32 %v265, %v926
    %v928 = vpop.f32.mrf.mxu0
    %v929 = vadd.f32 %v269, %v928
    %930 = vdwg.mxu0
    %v931 = vxor.u32 %v927, 2147483648
    %v932 = vxor.u32 %v929, 2147483648
    %v933 = vmul.f32 %v931, 1.442695
    %v934 = vpow.pop %v933
    %v935 = vmul.f32 %v932, 1.442695
    %v936 = vpow.pop %v935
    %v937 = vadd.f32 %v934, 1.0
    %v938 = vadd.f32 %v936, 1.0
    %v939 = vrcp.pop %v937
    %v940 = vmul.f32 1.0, %v939
    %v941 = vrcp.pop %v938
    %v942 = vmul.f32 1.0, %v941
    %v943 = vtanh.pop %v929
    %v944 = vmul.f32 %v940, %v739
    %946 = vrot.lane.b32.xlu0 %v943, 64
    %v947 = vpop.permute.xlu0 %946
    %v949 = vmul.f32 %v940, %v947
    %951 = vrot.lane.b32.xlu0 %v949, 64
    %v952 = vpop.permute.xlu0 %951
    %v954 = vadd.f32 %v944, %v952
    %v955 = vtanh.pop %v954
    %957 = vrot.lane.b32.xlu0 %v955, 64
    %v958 = vpop.permute.xlu0 %957
    %v960 = vmul.f32 %v942, %v958
    %s961 = scalar_lea.vmem [#allocation2], 48
    %v962 = vld [vmem:[%s961] sm:$0xff]
    %v963 = vld [vmem:[%s961 + $0x8] sm:$0xff]
    %v965 = vsel %vm322, %v854, 0
    %967 = vmatprep.subr.mxu0 0.0
    %968 = vmatpush1.msra.mxu0 0.0
    %969 = vmatprep.subr.mxu0 0.0
    %970 = vmatpush1.msra.mxu0 0.0
    %971 = vmatprep.subr.mxu0 0.0
    %972 = vmatpush1.msra.mxu0 0.0
    %973 = vmatprep.subr.mxu0 0.0
    %974 = vmatpush1.msra.mxu0 0.0
    %975 = vmatprep.subr.mxu0 0.0
    %976 = vmatpush1.msra.mxu0 0.0
    %977 = vmatprep.subr.mxu0 0.0
    %978 = vmatpush1.msra.mxu0 0.0
    %979 = vmatprep.subr.mxu0 0.0
    %980 = vmatpush1.msra.mxu0 0.0
    %981 = vmatprep.subr.mxu0 0.0
    %982 = vmatpush1.msra.mxu0 0.0
    %983 = vmatprep.subr.mxu0 %v287
    %984 = vmatpush1.msra.mxu0 %v286
    %985 = vmatprep.subr.mxu0 %v285
    %986 = vmatpush1.msra.mxu0 %v284
    %987 = vmatprep.subr.mxu0 %v283
    %988 = vmatpush1.msra.mxu0 %v282
    %989 = vmatprep.subr.mxu0 %v281
    %990 = vmatpush1.msra.mxu0 %v280
    %991 = vmatprep.subr.mxu0 %v279
    %992 = vmatpush1.msra.mxu0 %v278
    %993 = vmatprep.subr.mxu0 %v277
    %994 = vmatpush1.msra.mxu0 %v276
    %995 = vmatprep.subr.mxu0 %v275
    %996 = vmatpush1.msra.mxu0 %v274
    %997 = vmatprep.subr.mxu0 %v273
    %998 = vmatpush1.msra.mxu0 %v272
    %999 = vmatprep.subr.mxu0 0.0
    %1000 = vmatpush2.msra.mxu0 0.0
    %1001 = vmatprep.subr.mxu0 0.0
    %1002 = vmatpush2.msra.mxu0 0.0
    %1003 = vmatprep.subr.mxu0 0.0
    %1004 = vmatpush2.msra.mxu0 0.0
    %1005 = vmatprep.subr.mxu0 0.0
    %1006 = vmatpush2.msra.mxu0 0.0
    %1007 = vmatprep.subr.mxu0 0.0
    %1008 = vmatpush2.msra.mxu0 0.0
    %1009 = vmatprep.subr.mxu0 0.0
    %1010 = vmatpush2.msra.mxu0 0.0
    %1011 = vmatprep.subr.mxu0 0.0
    %1012 = vmatpush2.msra.mxu0 0.0
    %1013 = vmatprep.subr.mxu0 0.0
    %1014 = vmatpush2.msra.mxu0 0.0
    %1015 = vmatprep.subr.mxu0 0.0
    %1016 = vmatpush2.msra.mxu0 0.0
    %1017 = vmatprep.subr.mxu0 0.0
    %1018 = vmatpush2.msra.mxu0 0.0
    %1019 = vmatprep.subr.mxu0 0.0
    %1020 = vmatpush2.msra.mxu0 0.0
    %1021 = vmatprep.subr.mxu0 0.0
    %1022 = vmatpush2.msra.mxu0 0.0
    %1023 = vmatprep.subr.mxu0 0.0
    %1024 = vmatpush2.msra.mxu0 0.0
    %1025 = vmatprep.subr.mxu0 0.0
    %1026 = vmatpush2.msra.mxu0 0.0
    %1027 = vmatprep.subr.mxu0 0.0
    %1028 = vmatpush2.msra.mxu0 0.0
    %1029 = vmatprep.subr.mxu0 0.0
    %1030 = vmatpush2.msra.mxu0 0.0
    %1031 = vmatprep.mubr.f32.mxu0 0.0
    %1032 = vmatmul.mubr.f32.gmra.mxu0 %v965
    %v1033 = vpop.f32.mrf.mxu0
    %v1034 = vadd.f32 0.0, %v1033
    %v1035 = vpop.f32.mrf.mxu0
    %v1036 = vadd.f32 0.0, %v1035
    %1037 = vdwg.mxu0
    %v1038 = vadd.f32 %v962, %v1034
    %v1039 = vadd.f32 %v963, %v1036
    %v1040 = vxor.u32 %v1038, 2147483648
    %v1041 = vxor.u32 %v1039, 2147483648
    %v1042 = vmul.f32 %v1040, 1.442695
    %v1043 = vpow.pop %v1042
    %v1044 = vmul.f32 %v1041, 1.442695
    %v1045 = vpow.pop %v1044
    %v1046 = vadd.f32 %v1043, 1.0
    %v1047 = vadd.f32 %v1045, 1.0
    %v1048 = vrcp.pop %v1046
    %v1049 = vmul.f32 1.0, %v1048
    %v1050 = vrcp.pop %v1047
    %v1051 = vmul.f32 1.0, %v1050
    %v1052 = vtanh.pop %v1039
    %v1053 = vmul.f32 %v1049, %v848
    %1055 = vrot.lane.b32.xlu0 %v1052, 64
    %v1056 = vpop.permute.xlu0 %1055
    %v1058 = vmul.f32 %v1049, %v1056
    %1060 = vrot.lane.b32.xlu0 %v1058, 64
    %v1061 = vpop.permute.xlu0 %1060
    %v1063 = vadd.f32 %v1053, %v1061
    %v1064 = vtanh.pop %v1063
    %1066 = vrot.lane.b32.xlu0 %v1064, 64
    %v1067 = vpop.permute.xlu0 %1066
    %v1069 = vmul.f32 %v1051, %v1067
    %1071 = vrot.lane.b32.xlu0 %v960, 64
    %v1072 = vpop.permute.xlu0 %1071
    %v1074 = vsel %vm322, %v1069, %v1072
    %1075 = vmatprep.subr.mxu0 %v319
    %1076 = vmatpush1.msra.mxu0 %v318
    %1077 = vmatprep.subr.mxu0 %v317
    %1078 = vmatpush1.msra.mxu0 %v316
    %1079 = vmatprep.subr.mxu0 %v315
    %1080 = vmatpush1.msra.mxu0 %v314
    %1081 = vmatprep.subr.mxu0 %v313
    %1082 = vmatpush1.msra.mxu0 %v312
    %1083 = vmatprep.subr.mxu0 %v311
    %1084 = vmatpush1.msra.mxu0 %v310
    %1085 = vmatprep.subr.mxu0 %v309
    %1086 = vmatpush1.msra.mxu0 %v308
    %1087 = vmatprep.subr.mxu0 %v307
    %1088 = vmatpush1.msra.mxu0 %v306
    %1089 = vmatprep.subr.mxu0 %v305
    %1090 = vmatpush1.msra.mxu0 %v304
    %1091 = vmatprep.subr.mxu0 %v303
    %1092 = vmatpush1.msra.mxu0 %v302
    %1093 = vmatprep.subr.mxu0 %v301
    %1094 = vmatpush1.msra.mxu0 %v300
    %1095 = vmatprep.subr.mxu0 %v299
    %1096 = vmatpush1.msra.mxu0 %v298
    %1097 = vmatprep.subr.mxu0 %v297
    %1098 = vmatpush1.msra.mxu0 %v296
    %1099 = vmatprep.subr.mxu0 %v295
    %1100 = vmatpush1.msra.mxu0 %v294
    %1101 = vmatprep.subr.mxu0 %v293
    %1102 = vmatpush1.msra.mxu0 %v292
    %1103 = vmatprep.subr.mxu0 %v291
    %1104 = vmatpush1.msra.mxu0 %v290
    %1105 = vmatprep.subr.mxu0 %v289
    %1106 = vmatpush1.msra.mxu0 %v288
    %1107 = vmatprep.subr.mxu0 0.0
    %1108 = vmatpush2.msra.mxu0 0.0
    %1109 = vmatprep.subr.mxu0 0.0
    %1110 = vmatpush2.msra.mxu0 0.0
    %1111 = vmatprep.subr.mxu0 0.0
    %1112 = vmatpush2.msra.mxu0 0.0
    %1113 = vmatprep.subr.mxu0 0.0
    %1114 = vmatpush2.msra.mxu0 0.0
    %1115 = vmatprep.subr.mxu0 0.0
    %1116 = vmatpush2.msra.mxu0 0.0
    %1117 = vmatprep.subr.mxu0 0.0
    %1118 = vmatpush2.msra.mxu0 0.0
    %1119 = vmatprep.subr.mxu0 0.0
    %1120 = vmatpush2.msra.mxu0 0.0
    %1121 = vmatprep.subr.mxu0 0.0
    %1122 = vmatpush2.msra.mxu0 0.0
    %1123 = vmatprep.subr.mxu0 0.0
    %1124 = vmatpush2.msra.mxu0 0.0
    %1125 = vmatprep.subr.mxu0 0.0
    %1126 = vmatpush2.msra.mxu0 0.0
    %1127 = vmatprep.subr.mxu0 0.0
    %1128 = vmatpush2.msra.mxu0 0.0
    %1129 = vmatprep.subr.mxu0 0.0
    %1130 = vmatpush2.msra.mxu0 0.0
    %1131 = vmatprep.subr.mxu0 0.0
    %1132 = vmatpush2.msra.mxu0 0.0
    %1133 = vmatprep.subr.mxu0 0.0
    %1134 = vmatpush2.msra.mxu0 0.0
    %1135 = vmatprep.subr.mxu0 0.0
    %1136 = vmatpush2.msra.mxu0 0.0
    %1137 = vmatprep.subr.mxu0 0.0
    %1138 = vmatpush2.msra.mxu0 0.0
    %1139 = vmatprep.mubr.f32.mxu0 0.0
    %1140 = vmatmul.mubr.f32.gmra.mxu0 %v1074
    %v1141 = vpop.f32.mrf.mxu0
    %v1142 = vadd.f32 %v265, %v1141
    %v1143 = vpop.f32.mrf.mxu0
    %v1144 = vadd.f32 %v269, %v1143
    %1145 = vdwg.mxu0
    %v1146 = vxor.u32 %v1142, 2147483648
    %v1147 = vxor.u32 %v1144, 2147483648
    %v1148 = vmul.f32 %v1146, 1.442695
    %v1149 = vpow.pop %v1148
    %v1150 = vmul.f32 %v1147, 1.442695
    %v1151 = vpow.pop %v1150
    %v1152 = vadd.f32 %v1149, 1.0
    %v1153 = vadd.f32 %v1151, 1.0
    %v1154 = vrcp.pop %v1152
    %v1155 = vmul.f32 1.0, %v1154
    %v1156 = vrcp.pop %v1153
    %v1157 = vmul.f32 1.0, %v1156
    %v1158 = vtanh.pop %v1144
    %v1159 = vmul.f32 %v1155, %v954
    %1161 = vrot.lane.b32.xlu0 %v1158, 64
    %v1162 = vpop.permute.xlu0 %1161
    %v1164 = vmul.f32 %v1155, %v1162
    %1166 = vrot.lane.b32.xlu0 %v1164, 64
    %v1167 = vpop.permute.xlu0 %1166
    %v1169 = vadd.f32 %v1159, %v1167
    %v1170 = vtanh.pop %v1169
    %1172 = vrot.lane.b32.xlu0 %v1170, 64
    %v1173 = vpop.permute.xlu0 %1172
    %v1175 = vmul.f32 %v1157, %v1173
    %s1176 = scalar_lea.vmem [#allocation2], 64
    %v1177 = vld [vmem:[%s1176] sm:$0xff]
    %v1178 = vld [vmem:[%s1176 + $0x8] sm:$0xff]
    %v1180 = vsel %vm322, %v1069, 0
    %1182 = vmatprep.subr.mxu0 0.0
    %1183 = vmatpush1.msra.mxu0 0.0
    %1184 = vmatprep.subr.mxu0 0.0
    %1185 = vmatpush1.msra.mxu0 0.0
    %1186 = vmatprep.subr.mxu0 0.0
    %1187 = vmatpush1.msra.mxu0 0.0
    %1188 = vmatprep.subr.mxu0 0.0
    %1189 = vmatpush1.msra.mxu0 0.0
    %1190 = vmatprep.subr.mxu0 0.0
    %1191 = vmatpush1.msra.mxu0 0.0
    %1192 = vmatprep.subr.mxu0 0.0
    %1193 = vmatpush1.msra.mxu0 0.0
    %1194 = vmatprep.subr.mxu0 0.0
    %1195 = vmatpush1.msra.mxu0 0.0
    %1196 = vmatprep.subr.mxu0 0.0
    %1197 = vmatpush1.msra.mxu0 0.0
    %1198 = vmatprep.subr.mxu0 %v287
    %1199 = vmatpush1.msra.mxu0 %v286
    %1200 = vmatprep.subr.mxu0 %v285
    %1201 = vmatpush1.msra.mxu0 %v284
    %1202 = vmatprep.subr.mxu0 %v283
    %1203 = vmatpush1.msra.mxu0 %v282
    %1204 = vmatprep.subr.mxu0 %v281
    %1205 = vmatpush1.msra.mxu0 %v280
    %1206 = vmatprep.subr.mxu0 %v279
    %1207 = vmatpush1.msra.mxu0 %v278
    %1208 = vmatprep.subr.mxu0 %v277
    %1209 = vmatpush1.msra.mxu0 %v276
    %1210 = vmatprep.subr.mxu0 %v275
    %1211 = vmatpush1.msra.mxu0 %v274
    %1212 = vmatprep.subr.mxu0 %v273
    %1213 = vmatpush1.msra.mxu0 %v272
    %1214 = vmatprep.subr.mxu0 0.0
    %1215 = vmatpush2.msra.mxu0 0.0
    %1216 = vmatprep.subr.mxu0 0.0
    %1217 = vmatpush2.msra.mxu0 0.0
    %1218 = vmatprep.subr.mxu0 0.0
    %1219 = vmatpush2.msra.mxu0 0.0
    %1220 = vmatprep.subr.mxu0 0.0
    %1221 = vmatpush2.msra.mxu0 0.0
    %1222 = vmatprep.subr.mxu0 0.0
    %1223 = vmatpush2.msra.mxu0 0.0
    %1224 = vmatprep.subr.mxu0 0.0
    %1225 = vmatpush2.msra.mxu0 0.0
    %1226 = vmatprep.subr.mxu0 0.0
    %1227 = vmatpush2.msra.mxu0 0.0
    %1228 = vmatprep.subr.mxu0 0.0
    %1229 = vmatpush2.msra.mxu0 0.0
    %1230 = vmatprep.subr.mxu0 0.0
    %1231 = vmatpush2.msra.mxu0 0.0
    %1232 = vmatprep.subr.mxu0 0.0
    %1233 = vmatpush2.msra.mxu0 0.0
    %1234 = vmatprep.subr.mxu0 0.0
    %1235 = vmatpush2.msra.mxu0 0.0
    %1236 = vmatprep.subr.mxu0 0.0
    %1237 = vmatpush2.msra.mxu0 0.0
    %1238 = vmatprep.subr.mxu0 0.0
    %1239 = vmatpush2.msra.mxu0 0.0
    %1240 = vmatprep.subr.mxu0 0.0
    %1241 = vmatpush2.msra.mxu0 0.0
    %1242 = vmatprep.subr.mxu0 0.0
    %1243 = vmatpush2.msra.mxu0 0.0
    %1244 = vmatprep.subr.mxu0 0.0
    %1245 = vmatpush2.msra.mxu0 0.0
    %1246 = vmatprep.mubr.f32.mxu0 0.0
    %1247 = vmatmul.mubr.f32.gmra.mxu0 %v1180
    %v1248 = vpop.f32.mrf.mxu0
    %v1249 = vadd.f32 0.0, %v1248
    %v1250 = vpop.f32.mrf.mxu0
    %v1251 = vadd.f32 0.0, %v1250
    %1252 = vdwg.mxu0
    %v1253 = vadd.f32 %v1177, %v1249
    %v1254 = vadd.f32 %v1178, %v1251
    %v1255 = vxor.u32 %v1253, 2147483648
    %v1256 = vxor.u32 %v1254, 2147483648
    %v1257 = vmul.f32 %v1255, 1.442695
    %v1258 = vpow.pop %v1257
    %v1259 = vmul.f32 %v1256, 1.442695
    %v1260 = vpow.pop %v1259
    %v1261 = vadd.f32 %v1258, 1.0
    %v1262 = vadd.f32 %v1260, 1.0
    %v1263 = vrcp.pop %v1261
    %v1264 = vmul.f32 1.0, %v1263
    %v1265 = vrcp.pop %v1262
    %v1266 = vmul.f32 1.0, %v1265
    %v1267 = vtanh.pop %v1254
    %v1268 = vmul.f32 %v1264, %v1063
    %1270 = vrot.lane.b32.xlu0 %v1267, 64
    %v1271 = vpop.permute.xlu0 %1270
    %v1273 = vmul.f32 %v1264, %v1271
    %1275 = vrot.lane.b32.xlu0 %v1273, 64
    %v1276 = vpop.permute.xlu0 %1275
    %v1278 = vadd.f32 %v1268, %v1276
    %v1279 = vtanh.pop %v1278
    %1281 = vrot.lane.b32.xlu0 %v1279, 64
    %v1282 = vpop.permute.xlu0 %1281
    %v1284 = vmul.f32 %v1266, %v1282
    %1286 = vrot.lane.b32.xlu0 %v1175, 64
    %v1287 = vpop.permute.xlu0 %1286
    %v1289 = vsel %vm322, %v1284, %v1287
    %1290 = vmatprep.subr.mxu0 %v319
    %1291 = vmatpush1.msra.mxu0 %v318
    %1292 = vmatprep.subr.mxu0 %v317
    %1293 = vmatpush1.msra.mxu0 %v316
    %1294 = vmatprep.subr.mxu0 %v315
    %1295 = vmatpush1.msra.mxu0 %v314
    %1296 = vmatprep.subr.mxu0 %v313
    %1297 = vmatpush1.msra.mxu0 %v312
    %1298 = vmatprep.subr.mxu0 %v311
    %1299 = vmatpush1.msra.mxu0 %v310
    %1300 = vmatprep.subr.mxu0 %v309
    %1301 = vmatpush1.msra.mxu0 %v308
    %1302 = vmatprep.subr.mxu0 %v307
    %1303 = vmatpush1.msra.mxu0 %v306
    %1304 = vmatprep.subr.mxu0 %v305
    %1305 = vmatpush1.msra.mxu0 %v304
    %1306 = vmatprep.subr.mxu0 %v303
    %1307 = vmatpush1.msra.mxu0 %v302
    %1308 = vmatprep.subr.mxu0 %v301
    %1309 = vmatpush1.msra.mxu0 %v300
    %1310 = vmatprep.subr.mxu0 %v299
    %1311 = vmatpush1.msra.mxu0 %v298
    %1312 = vmatprep.subr.mxu0 %v297
    %1313 = vmatpush1.msra.mxu0 %v296
    %1314 = vmatprep.subr.mxu0 %v295
    %1315 = vmatpush1.msra.mxu0 %v294
    %1316 = vmatprep.subr.mxu0 %v293
    %1317 = vmatpush1.msra.mxu0 %v292
    %1318 = vmatprep.subr.mxu0 %v291
    %1319 = vmatpush1.msra.mxu0 %v290
    %1320 = vmatprep.subr.mxu0 %v289
    %1321 = vmatpush1.msra.mxu0 %v288
    %1322 = vmatprep.subr.mxu0 0.0
    %1323 = vmatpush2.msra.mxu0 0.0
    %1324 = vmatprep.subr.mxu0 0.0
    %1325 = vmatpush2.msra.mxu0 0.0
    %1326 = vmatprep.subr.mxu0 0.0
    %1327 = vmatpush2.msra.mxu0 0.0
    %1328 = vmatprep.subr.mxu0 0.0
    %1329 = vmatpush2.msra.mxu0 0.0
    %1330 = vmatprep.subr.mxu0 0.0
    %1331 = vmatpush2.msra.mxu0 0.0
    %1332 = vmatprep.subr.mxu0 0.0
    %1333 = vmatpush2.msra.mxu0 0.0
    %1334 = vmatprep.subr.mxu0 0.0
    %1335 = vmatpush2.msra.mxu0 0.0
    %1336 = vmatprep.subr.mxu0 0.0
    %1337 = vmatpush2.msra.mxu0 0.0
    %1338 = vmatprep.subr.mxu0 0.0
    %1339 = vmatpush2.msra.mxu0 0.0
    %1340 = vmatprep.subr.mxu0 0.0
    %1341 = vmatpush2.msra.mxu0 0.0
    %1342 = vmatprep.subr.mxu0 0.0
    %1343 = vmatpush2.msra.mxu0 0.0
    %1344 = vmatprep.subr.mxu0 0.0
    %1345 = vmatpush2.msra.mxu0 0.0
    %1346 = vmatprep.subr.mxu0 0.0
    %1347 = vmatpush2.msra.mxu0 0.0
    %1348 = vmatprep.subr.mxu0 0.0
    %1349 = vmatpush2.msra.mxu0 0.0
    %1350 = vmatprep.subr.mxu0 0.0
    %1351 = vmatpush2.msra.mxu0 0.0
    %1352 = vmatprep.subr.mxu0 0.0
    %1353 = vmatpush2.msra.mxu0 0.0
    %1354 = vmatprep.mubr.f32.mxu0 0.0
    %1355 = vmatmul.mubr.f32.gmra.mxu0 %v1289
    %v1356 = vpop.f32.mrf.mxu0
    %v1357 = vadd.f32 %v265, %v1356
    %v1358 = vpop.f32.mrf.mxu0
    %v1359 = vadd.f32 %v269, %v1358
    %1360 = vdwg.mxu0
    %v1361 = vxor.u32 %v1357, 2147483648
    %v1362 = vxor.u32 %v1359, 2147483648
    %v1363 = vmul.f32 %v1361, 1.442695
    %v1364 = vpow.pop %v1363
    %v1365 = vmul.f32 %v1362, 1.442695
    %v1366 = vpow.pop %v1365
    %v1367 = vadd.f32 %v1364, 1.0
    %v1368 = vadd.f32 %v1366, 1.0
    %v1369 = vrcp.pop %v1367
    %v1370 = vmul.f32 1.0, %v1369
    %v1371 = vrcp.pop %v1368
    %v1372 = vmul.f32 1.0, %v1371
    %v1373 = vtanh.pop %v1359
    %v1374 = vmul.f32 %v1370, %v1169
    %1376 = vrot.lane.b32.xlu0 %v1373, 64
    %v1377 = vpop.permute.xlu0 %1376
    %v1379 = vmul.f32 %v1370, %v1377
    %1381 = vrot.lane.b32.xlu0 %v1379, 64
    %v1382 = vpop.permute.xlu0 %1381
    %v1384 = vadd.f32 %v1374, %v1382
    %v1385 = vtanh.pop %v1384
    %1387 = vrot.lane.b32.xlu0 %v1385, 64
    %v1388 = vpop.permute.xlu0 %1387
    %v1390 = vmul.f32 %v1372, %v1388
    %s1391 = scalar_lea.vmem [#allocation2], 80
    %v1392 = vld [vmem:[%s1391] sm:$0xff]
    %v1393 = vld [vmem:[%s1391 + $0x8] sm:$0xff]
    %v1395 = vsel %vm322, %v1284, 0
    %1397 = vmatprep.subr.mxu0 0.0
    %1398 = vmatpush1.msra.mxu0 0.0
    %1399 = vmatprep.subr.mxu0 0.0
    %1400 = vmatpush1.msra.mxu0 0.0
    %1401 = vmatprep.subr.mxu0 0.0
    %1402 = vmatpush1.msra.mxu0 0.0
    %1403 = vmatprep.subr.mxu0 0.0
    %1404 = vmatpush1.msra.mxu0 0.0
    %1405 = vmatprep.subr.mxu0 0.0
    %1406 = vmatpush1.msra.mxu0 0.0
    %1407 = vmatprep.subr.mxu0 0.0
    %1408 = vmatpush1.msra.mxu0 0.0
    %1409 = vmatprep.subr.mxu0 0.0
    %1410 = vmatpush1.msra.mxu0 0.0
    %1411 = vmatprep.subr.mxu0 0.0
    %1412 = vmatpush1.msra.mxu0 0.0
    %1413 = vmatprep.subr.mxu0 %v287
    %1414 = vmatpush1.msra.mxu0 %v286
    %1415 = vmatprep.subr.mxu0 %v285
    %1416 = vmatpush1.msra.mxu0 %v284
    %1417 = vmatprep.subr.mxu0 %v283
    %1418 = vmatpush1.msra.mxu0 %v282
    %1419 = vmatprep.subr.mxu0 %v281
    %1420 = vmatpush1.msra.mxu0 %v280
    %1421 = vmatprep.subr.mxu0 %v279
    %1422 = vmatpush1.msra.mxu0 %v278
    %1423 = vmatprep.subr.mxu0 %v277
    %1424 = vmatpush1.msra.mxu0 %v276
    %1425 = vmatprep.subr.mxu0 %v275
    %1426 = vmatpush1.msra.mxu0 %v274
    %1427 = vmatprep.subr.mxu0 %v273
    %1428 = vmatpush1.msra.mxu0 %v272
    %1429 = vmatprep.subr.mxu0 0.0
    %1430 = vmatpush2.msra.mxu0 0.0
    %1431 = vmatprep.subr.mxu0 0.0
    %1432 = vmatpush2.msra.mxu0 0.0
    %1433 = vmatprep.subr.mxu0 0.0
    %1434 = vmatpush2.msra.mxu0 0.0
    %1435 = vmatprep.subr.mxu0 0.0
    %1436 = vmatpush2.msra.mxu0 0.0
    %1437 = vmatprep.subr.mxu0 0.0
    %1438 = vmatpush2.msra.mxu0 0.0
    %1439 = vmatprep.subr.mxu0 0.0
    %1440 = vmatpush2.msra.mxu0 0.0
    %1441 = vmatprep.subr.mxu0 0.0
    %1442 = vmatpush2.msra.mxu0 0.0
    %1443 = vmatprep.subr.mxu0 0.0
    %1444 = vmatpush2.msra.mxu0 0.0
    %1445 = vmatprep.subr.mxu0 0.0
    %1446 = vmatpush2.msra.mxu0 0.0
    %1447 = vmatprep.subr.mxu0 0.0
    %1448 = vmatpush2.msra.mxu0 0.0
    %1449 = vmatprep.subr.mxu0 0.0
    %1450 = vmatpush2.msra.mxu0 0.0
    %1451 = vmatprep.subr.mxu0 0.0
    %1452 = vmatpush2.msra.mxu0 0.0
    %1453 = vmatprep.subr.mxu0 0.0
    %1454 = vmatpush2.msra.mxu0 0.0
    %1455 = vmatprep.subr.mxu0 0.0
    %1456 = vmatpush2.msra.mxu0 0.0
    %1457 = vmatprep.subr.mxu0 0.0
    %1458 = vmatpush2.msra.mxu0 0.0
    %1459 = vmatprep.subr.mxu0 0.0
    %1460 = vmatpush2.msra.mxu0 0.0
    %1461 = vmatprep.mubr.f32.mxu0 0.0
    %1462 = vmatmul.mubr.f32.gmra.mxu0 %v1395
    %v1463 = vpop.f32.mrf.mxu0
    %v1464 = vadd.f32 0.0, %v1463
    %v1465 = vpop.f32.mrf.mxu0
    %v1466 = vadd.f32 0.0, %v1465
    %1467 = vdwg.mxu0
    %v1468 = vadd.f32 %v1392, %v1464
    %v1469 = vadd.f32 %v1393, %v1466
    %v1470 = vxor.u32 %v1468, 2147483648
    %v1471 = vxor.u32 %v1469, 2147483648
    %v1472 = vmul.f32 %v1470, 1.442695
    %v1473 = vpow.pop %v1472
    %v1474 = vmul.f32 %v1471, 1.442695
    %v1475 = vpow.pop %v1474
    %v1476 = vadd.f32 %v1473, 1.0
    %v1477 = vadd.f32 %v1475, 1.0
    %v1478 = vrcp.pop %v1476
    %v1479 = vmul.f32 1.0, %v1478
    %v1480 = vrcp.pop %v1477
    %v1481 = vmul.f32 1.0, %v1480
    %v1482 = vtanh.pop %v1469
    %v1483 = vmul.f32 %v1479, %v1278
    %1485 = vrot.lane.b32.xlu0 %v1482, 64
    %v1486 = vpop.permute.xlu0 %1485
    %v1488 = vmul.f32 %v1479, %v1486
    %1490 = vrot.lane.b32.xlu0 %v1488, 64
    %v1491 = vpop.permute.xlu0 %1490
    %v1493 = vadd.f32 %v1483, %v1491
    %v1494 = vtanh.pop %v1493
    %1496 = vrot.lane.b32.xlu0 %v1494, 64
    %v1497 = vpop.permute.xlu0 %1496
    %v1499 = vmul.f32 %v1481, %v1497
    %1501 = vrot.lane.b32.xlu0 %v1390, 64
    %v1502 = vpop.permute.xlu0 %1501
    %v1504 = vsel %vm322, %v1499, %v1502
    %1505 = vmatprep.subr.mxu0 %v319
    %1506 = vmatpush1.msra.mxu0 %v318
    %1507 = vmatprep.subr.mxu0 %v317
    %1508 = vmatpush1.msra.mxu0 %v316
    %1509 = vmatprep.subr.mxu0 %v315
    %1510 = vmatpush1.msra.mxu0 %v314
    %1511 = vmatprep.subr.mxu0 %v313
    %1512 = vmatpush1.msra.mxu0 %v312
    %1513 = vmatprep.subr.mxu0 %v311
    %1514 = vmatpush1.msra.mxu0 %v310
    %1515 = vmatprep.subr.mxu0 %v309
    %1516 = vmatpush1.msra.mxu0 %v308
    %1517 = vmatprep.subr.mxu0 %v307
    %1518 = vmatpush1.msra.mxu0 %v306
    %1519 = vmatprep.subr.mxu0 %v305
    %1520 = vmatpush1.msra.mxu0 %v304
    %1521 = vmatprep.subr.mxu0 %v303
    %1522 = vmatpush1.msra.mxu0 %v302
    %1523 = vmatprep.subr.mxu0 %v301
    %1524 = vmatpush1.msra.mxu0 %v300
    %1525 = vmatprep.subr.mxu0 %v299
    %1526 = vmatpush1.msra.mxu0 %v298
    %1527 = vmatprep.subr.mxu0 %v297
    %1528 = vmatpush1.msra.mxu0 %v296
    %1529 = vmatprep.subr.mxu0 %v295
    %1530 = vmatpush1.msra.mxu0 %v294
    %1531 = vmatprep.subr.mxu0 %v293
    %1532 = vmatpush1.msra.mxu0 %v292
    %1533 = vmatprep.subr.mxu0 %v291
    %1534 = vmatpush1.msra.mxu0 %v290
    %1535 = vmatprep.subr.mxu0 %v289
    %1536 = vmatpush1.msra.mxu0 %v288
    %1537 = vmatprep.subr.mxu0 0.0
    %1538 = vmatpush2.msra.mxu0 0.0
    %1539 = vmatprep.subr.mxu0 0.0
    %1540 = vmatpush2.msra.mxu0 0.0
    %1541 = vmatprep.subr.mxu0 0.0
    %1542 = vmatpush2.msra.mxu0 0.0
    %1543 = vmatprep.subr.mxu0 0.0
    %1544 = vmatpush2.msra.mxu0 0.0
    %1545 = vmatprep.subr.mxu0 0.0
    %1546 = vmatpush2.msra.mxu0 0.0
    %1547 = vmatprep.subr.mxu0 0.0
    %1548 = vmatpush2.msra.mxu0 0.0
    %1549 = vmatprep.subr.mxu0 0.0
    %1550 = vmatpush2.msra.mxu0 0.0
    %1551 = vmatprep.subr.mxu0 0.0
    %1552 = vmatpush2.msra.mxu0 0.0
    %1553 = vmatprep.subr.mxu0 0.0
    %1554 = vmatpush2.msra.mxu0 0.0
    %1555 = vmatprep.subr.mxu0 0.0
    %1556 = vmatpush2.msra.mxu0 0.0
    %1557 = vmatprep.subr.mxu0 0.0
    %1558 = vmatpush2.msra.mxu0 0.0
    %1559 = vmatprep.subr.mxu0 0.0
    %1560 = vmatpush2.msra.mxu0 0.0
    %1561 = vmatprep.subr.mxu0 0.0
    %1562 = vmatpush2.msra.mxu0 0.0
    %1563 = vmatprep.subr.mxu0 0.0
    %1564 = vmatpush2.msra.mxu0 0.0
    %1565 = vmatprep.subr.mxu0 0.0
    %1566 = vmatpush2.msra.mxu0 0.0
    %1567 = vmatprep.subr.mxu0 0.0
    %1568 = vmatpush2.msra.mxu0 0.0
    %1569 = vmatprep.mubr.f32.mxu0 0.0
    %1570 = vmatmul.mubr.f32.gmra.mxu0 %v1504
    %v1571 = vpop.f32.mrf.mxu0
    %v1572 = vadd.f32 %v265, %v1571
    %v1573 = vpop.f32.mrf.mxu0
    %v1574 = vadd.f32 %v269, %v1573
    %1575 = vdwg.mxu0
    %v1576 = vxor.u32 %v1572, 2147483648
    %v1577 = vxor.u32 %v1574, 2147483648
    %v1578 = vmul.f32 %v1576, 1.442695
    %v1579 = vpow.pop %v1578
    %v1580 = vmul.f32 %v1577, 1.442695
    %v1581 = vpow.pop %v1580
    %v1582 = vadd.f32 %v1579, 1.0
    %v1583 = vadd.f32 %v1581, 1.0
    %v1584 = vrcp.pop %v1582
    %v1585 = vmul.f32 1.0, %v1584
    %v1586 = vrcp.pop %v1583
    %v1587 = vmul.f32 1.0, %v1586
    %v1588 = vtanh.pop %v1574
    %v1589 = vmul.f32 %v1585, %v1384
    %1591 = vrot.lane.b32.xlu0 %v1588, 64
    %v1592 = vpop.permute.xlu0 %1591
    %v1594 = vmul.f32 %v1585, %v1592
    %1596 = vrot.lane.b32.xlu0 %v1594, 64
    %v1597 = vpop.permute.xlu0 %1596
    %v1599 = vadd.f32 %v1589, %v1597
    %v1600 = vtanh.pop %v1599
    %1602 = vrot.lane.b32.xlu0 %v1600, 64
    %v1603 = vpop.permute.xlu0 %1602
    %v1605 = vmul.f32 %v1587, %v1603
    %s1606 = scalar_lea.vmem [#allocation2], 96
    %v1607 = vld [vmem:[%s1606] sm:$0xff]
    %v1608 = vld [vmem:[%s1606 + $0x8] sm:$0xff]
    %v1610 = vsel %vm322, %v1499, 0
    %1612 = vmatprep.subr.mxu0 0.0
    %1613 = vmatpush1.msra.mxu0 0.0
    %1614 = vmatprep.subr.mxu0 0.0
    %1615 = vmatpush1.msra.mxu0 0.0
    %1616 = vmatprep.subr.mxu0 0.0
    %1617 = vmatpush1.msra.mxu0 0.0
    %1618 = vmatprep.subr.mxu0 0.0
    %1619 = vmatpush1.msra.mxu0 0.0
    %1620 = vmatprep.subr.mxu0 0.0
    %1621 = vmatpush1.msra.mxu0 0.0
    %1622 = vmatprep.subr.mxu0 0.0
    %1623 = vmatpush1.msra.mxu0 0.0
    %1624 = vmatprep.subr.mxu0 0.0
    %1625 = vmatpush1.msra.mxu0 0.0
    %1626 = vmatprep.subr.mxu0 0.0
    %1627 = vmatpush1.msra.mxu0 0.0
    %1628 = vmatprep.subr.mxu0 %v287
    %1629 = vmatpush1.msra.mxu0 %v286
    %1630 = vmatprep.subr.mxu0 %v285
    %1631 = vmatpush1.msra.mxu0 %v284
    %1632 = vmatprep.subr.mxu0 %v283
    %1633 = vmatpush1.msra.mxu0 %v282
    %1634 = vmatprep.subr.mxu0 %v281
    %1635 = vmatpush1.msra.mxu0 %v280
    %1636 = vmatprep.subr.mxu0 %v279
    %1637 = vmatpush1.msra.mxu0 %v278
    %1638 = vmatprep.subr.mxu0 %v277
    %1639 = vmatpush1.msra.mxu0 %v276
    %1640 = vmatprep.subr.mxu0 %v275
    %1641 = vmatpush1.msra.mxu0 %v274
    %1642 = vmatprep.subr.mxu0 %v273
    %1643 = vmatpush1.msra.mxu0 %v272
    %1644 = vmatprep.subr.mxu0 0.0
    %1645 = vmatpush2.msra.mxu0 0.0
    %1646 = vmatprep.subr.mxu0 0.0
    %1647 = vmatpush2.msra.mxu0 0.0
    %1648 = vmatprep.subr.mxu0 0.0
    %1649 = vmatpush2.msra.mxu0 0.0
    %1650 = vmatprep.subr.mxu0 0.0
    %1651 = vmatpush2.msra.mxu0 0.0
    %1652 = vmatprep.subr.mxu0 0.0
    %1653 = vmatpush2.msra.mxu0 0.0
    %1654 = vmatprep.subr.mxu0 0.0
    %1655 = vmatpush2.msra.mxu0 0.0
    %1656 = vmatprep.subr.mxu0 0.0
    %1657 = vmatpush2.msra.mxu0 0.0
    %1658 = vmatprep.subr.mxu0 0.0
    %1659 = vmatpush2.msra.mxu0 0.0
    %1660 = vmatprep.subr.mxu0 0.0
    %1661 = vmatpush2.msra.mxu0 0.0
    %1662 = vmatprep.subr.mxu0 0.0
    %1663 = vmatpush2.msra.mxu0 0.0
    %1664 = vmatprep.subr.mxu0 0.0
    %1665 = vmatpush2.msra.mxu0 0.0
    %1666 = vmatprep.subr.mxu0 0.0
    %1667 = vmatpush2.msra.mxu0 0.0
    %1668 = vmatprep.subr.mxu0 0.0
    %1669 = vmatpush2.msra.mxu0 0.0
    %1670 = vmatprep.subr.mxu0 0.0
    %1671 = vmatpush2.msra.mxu0 0.0
    %1672 = vmatprep.subr.mxu0 0.0
    %1673 = vmatpush2.msra.mxu0 0.0
    %1674 = vmatprep.subr.mxu0 0.0
    %1675 = vmatpush2.msra.mxu0 0.0
    %1676 = vmatprep.mubr.f32.mxu0 0.0
    %1677 = vmatmul.mubr.f32.gmra.mxu0 %v1610
    %v1678 = vpop.f32.mrf.mxu0
    %v1679 = vadd.f32 0.0, %v1678
    %v1680 = vpop.f32.mrf.mxu0
    %v1681 = vadd.f32 0.0, %v1680
    %1682 = vdwg.mxu0
    %v1683 = vadd.f32 %v1607, %v1679
    %v1684 = vadd.f32 %v1608, %v1681
    %v1685 = vxor.u32 %v1683, 2147483648
    %v1686 = vxor.u32 %v1684, 2147483648
    %v1687 = vmul.f32 %v1685, 1.442695
    %v1688 = vpow.pop %v1687
    %v1689 = vmul.f32 %v1686, 1.442695
    %v1690 = vpow.pop %v1689
    %v1691 = vadd.f32 %v1688, 1.0
    %v1692 = vadd.f32 %v1690, 1.0
    %v1693 = vrcp.pop %v1691
    %v1694 = vmul.f32 1.0, %v1693
    %v1695 = vrcp.pop %v1692
    %v1696 = vmul.f32 1.0, %v1695
    %v1697 = vtanh.pop %v1684
    %v1698 = vmul.f32 %v1694, %v1493
    %1700 = vrot.lane.b32.xlu0 %v1697, 64
    %v1701 = vpop.permute.xlu0 %1700
    %v1703 = vmul.f32 %v1694, %v1701
    %1705 = vrot.lane.b32.xlu0 %v1703, 64
    %v1706 = vpop.permute.xlu0 %1705
    %v1708 = vadd.f32 %v1698, %v1706
    %v1709 = vtanh.pop %v1708
    %1711 = vrot.lane.b32.xlu0 %v1709, 64
    %v1712 = vpop.permute.xlu0 %1711
    %v1714 = vmul.f32 %v1696, %v1712
    %1716 = vrot.lane.b32.xlu0 %v1605, 64
    %v1717 = vpop.permute.xlu0 %1716
    %v1719 = vsel %vm322, %v1714, %v1717
    %1720 = vmatprep.subr.mxu0 %v319
    %1721 = vmatpush1.msra.mxu0 %v318
    %1722 = vmatprep.subr.mxu0 %v317
    %1723 = vmatpush1.msra.mxu0 %v316
    %1724 = vmatprep.subr.mxu0 %v315
    %1725 = vmatpush1.msra.mxu0 %v314
    %1726 = vmatprep.subr.mxu0 %v313
    %1727 = vmatpush1.msra.mxu0 %v312
    %1728 = vmatprep.subr.mxu0 %v311
    %1729 = vmatpush1.msra.mxu0 %v310
    %1730 = vmatprep.subr.mxu0 %v309
    %1731 = vmatpush1.msra.mxu0 %v308
    %1732 = vmatprep.subr.mxu0 %v307
    %1733 = vmatpush1.msra.mxu0 %v306
    %1734 = vmatprep.subr.mxu0 %v305
    %1735 = vmatpush1.msra.mxu0 %v304
    %1736 = vmatprep.subr.mxu0 %v303
    %1737 = vmatpush1.msra.mxu0 %v302
    %1738 = vmatprep.subr.mxu0 %v301
    %1739 = vmatpush1.msra.mxu0 %v300
    %1740 = vmatprep.subr.mxu0 %v299
    %1741 = vmatpush1.msra.mxu0 %v298
    %1742 = vmatprep.subr.mxu0 %v297
    %1743 = vmatpush1.msra.mxu0 %v296
    %1744 = vmatprep.subr.mxu0 %v295
    %1745 = vmatpush1.msra.mxu0 %v294
    %1746 = vmatprep.subr.mxu0 %v293
    %1747 = vmatpush1.msra.mxu0 %v292
    %1748 = vmatprep.subr.mxu0 %v291
    %1749 = vmatpush1.msra.mxu0 %v290
    %1750 = vmatprep.subr.mxu0 %v289
    %1751 = vmatpush1.msra.mxu0 %v288
    %1752 = vmatprep.subr.mxu0 0.0
    %1753 = vmatpush2.msra.mxu0 0.0
    %1754 = vmatprep.subr.mxu0 0.0
    %1755 = vmatpush2.msra.mxu0 0.0
    %1756 = vmatprep.subr.mxu0 0.0
    %1757 = vmatpush2.msra.mxu0 0.0
    %1758 = vmatprep.subr.mxu0 0.0
    %1759 = vmatpush2.msra.mxu0 0.0
    %1760 = vmatprep.subr.mxu0 0.0
    %1761 = vmatpush2.msra.mxu0 0.0
    %1762 = vmatprep.subr.mxu0 0.0
    %1763 = vmatpush2.msra.mxu0 0.0
    %1764 = vmatprep.subr.mxu0 0.0
    %1765 = vmatpush2.msra.mxu0 0.0
    %1766 = vmatprep.subr.mxu0 0.0
    %1767 = vmatpush2.msra.mxu0 0.0
    %1768 = vmatprep.subr.mxu0 0.0
    %1769 = vmatpush2.msra.mxu0 0.0
    %1770 = vmatprep.subr.mxu0 0.0
    %1771 = vmatpush2.msra.mxu0 0.0
    %1772 = vmatprep.subr.mxu0 0.0
    %1773 = vmatpush2.msra.mxu0 0.0
    %1774 = vmatprep.subr.mxu0 0.0
    %1775 = vmatpush2.msra.mxu0 0.0
    %1776 = vmatprep.subr.mxu0 0.0
    %1777 = vmatpush2.msra.mxu0 0.0
    %1778 = vmatprep.subr.mxu0 0.0
    %1779 = vmatpush2.msra.mxu0 0.0
    %1780 = vmatprep.subr.mxu0 0.0
    %1781 = vmatpush2.msra.mxu0 0.0
    %1782 = vmatprep.subr.mxu0 0.0
    %1783 = vmatpush2.msra.mxu0 0.0
    %1784 = vmatprep.mubr.f32.mxu0 0.0
    %1785 = vmatmul.mubr.f32.gmra.mxu0 %v1719
    %v1786 = vpop.f32.mrf.mxu0
    %v1787 = vadd.f32 %v265, %v1786
    %v1788 = vpop.f32.mrf.mxu0
    %v1789 = vadd.f32 %v269, %v1788
    %1790 = vdwg.mxu0
    %v1791 = vxor.u32 %v1787, 2147483648
    %v1792 = vxor.u32 %v1789, 2147483648
    %v1793 = vmul.f32 %v1791, 1.442695
    %v1794 = vpow.pop %v1793
    %v1795 = vmul.f32 %v1792, 1.442695
    %v1796 = vpow.pop %v1795
    %v1797 = vadd.f32 %v1794, 1.0
    %v1798 = vadd.f32 %v1796, 1.0
    %v1799 = vrcp.pop %v1797
    %v1800 = vmul.f32 1.0, %v1799
    %v1801 = vrcp.pop %v1798
    %v1802 = vmul.f32 1.0, %v1801
    %v1803 = vtanh.pop %v1789
    %v1804 = vmul.f32 %v1800, %v1599
    %1806 = vrot.lane.b32.xlu0 %v1803, 64
    %v1807 = vpop.permute.xlu0 %1806
    %v1809 = vmul.f32 %v1800, %v1807
    %1811 = vrot.lane.b32.xlu0 %v1809, 64
    %v1812 = vpop.permute.xlu0 %1811
    %v1814 = vadd.f32 %v1804, %v1812
    %v1815 = vtanh.pop %v1814
    %1817 = vrot.lane.b32.xlu0 %v1815, 64
    %v1818 = vpop.permute.xlu0 %1817
    %v1820 = vmul.f32 %v1802, %v1818
    %s1821 = scalar_lea.vmem [#allocation2], 112
    %v1822 = vld [vmem:[%s1821] sm:$0xff]
    %v1823 = vld [vmem:[%s1821 + $0x8] sm:$0xff]
    %v1825 = vsel %vm322, %v1714, 0
    %1827 = vmatprep.subr.mxu0 0.0
    %1828 = vmatpush1.msra.mxu0 0.0
    %1829 = vmatprep.subr.mxu0 0.0
    %1830 = vmatpush1.msra.mxu0 0.0
    %1831 = vmatprep.subr.mxu0 0.0
    %1832 = vmatpush1.msra.mxu0 0.0
    %1833 = vmatprep.subr.mxu0 0.0
    %1834 = vmatpush1.msra.mxu0 0.0
    %1835 = vmatprep.subr.mxu0 0.0
    %1836 = vmatpush1.msra.mxu0 0.0
    %1837 = vmatprep.subr.mxu0 0.0
    %1838 = vmatpush1.msra.mxu0 0.0
    %1839 = vmatprep.subr.mxu0 0.0
    %1840 = vmatpush1.msra.mxu0 0.0
    %1841 = vmatprep.subr.mxu0 0.0
    %1842 = vmatpush1.msra.mxu0 0.0
    %1843 = vmatprep.subr.mxu0 %v287
    %1844 = vmatpush1.msra.mxu0 %v286
    %1845 = vmatprep.subr.mxu0 %v285
    %1846 = vmatpush1.msra.mxu0 %v284
    %1847 = vmatprep.subr.mxu0 %v283
    %1848 = vmatpush1.msra.mxu0 %v282
    %1849 = vmatprep.subr.mxu0 %v281
    %1850 = vmatpush1.msra.mxu0 %v280
    %1851 = vmatprep.subr.mxu0 %v279
    %1852 = vmatpush1.msra.mxu0 %v278
    %1853 = vmatprep.subr.mxu0 %v277
    %1854 = vmatpush1.msra.mxu0 %v276
    %1855 = vmatprep.subr.mxu0 %v275
    %1856 = vmatpush1.msra.mxu0 %v274
    %1857 = vmatprep.subr.mxu0 %v273
    %1858 = vmatpush1.msra.mxu0 %v272
    %1859 = vmatprep.subr.mxu0 0.0
    %1860 = vmatpush2.msra.mxu0 0.0
    %1861 = vmatprep.subr.mxu0 0.0
    %1862 = vmatpush2.msra.mxu0 0.0
    %1863 = vmatprep.subr.mxu0 0.0
    %1864 = vmatpush2.msra.mxu0 0.0
    %1865 = vmatprep.subr.mxu0 0.0
    %1866 = vmatpush2.msra.mxu0 0.0
    %1867 = vmatprep.subr.mxu0 0.0
    %1868 = vmatpush2.msra.mxu0 0.0
    %1869 = vmatprep.subr.mxu0 0.0
    %1870 = vmatpush2.msra.mxu0 0.0
    %1871 = vmatprep.subr.mxu0 0.0
    %1872 = vmatpush2.msra.mxu0 0.0
    %1873 = vmatprep.subr.mxu0 0.0
    %1874 = vmatpush2.msra.mxu0 0.0
    %1875 = vmatprep.subr.mxu0 0.0
    %1876 = vmatpush2.msra.mxu0 0.0
    %1877 = vmatprep.subr.mxu0 0.0
    %1878 = vmatpush2.msra.mxu0 0.0
    %1879 = vmatprep.subr.mxu0 0.0
    %1880 = vmatpush2.msra.mxu0 0.0
    %1881 = vmatprep.subr.mxu0 0.0
    %1882 = vmatpush2.msra.mxu0 0.0
    %1883 = vmatprep.subr.mxu0 0.0
    %1884 = vmatpush2.msra.mxu0 0.0
    %1885 = vmatprep.subr.mxu0 0.0
    %1886 = vmatpush2.msra.mxu0 0.0
    %1887 = vmatprep.subr.mxu0 0.0
    %1888 = vmatpush2.msra.mxu0 0.0
    %1889 = vmatprep.subr.mxu0 0.0
    %1890 = vmatpush2.msra.mxu0 0.0
    %1891 = vmatprep.mubr.f32.mxu0 0.0
    %1892 = vmatmul.mubr.f32.gmra.mxu0 %v1825
    %v1893 = vpop.f32.mrf.mxu0
    %v1894 = vadd.f32 0.0, %v1893
    %v1895 = vpop.f32.mrf.mxu0
    %v1896 = vadd.f32 0.0, %v1895
    %1897 = vdwg.mxu0
    %v1898 = vadd.f32 %v1822, %v1894
    %v1899 = vadd.f32 %v1823, %v1896
    %v1900 = vxor.u32 %v1898, 2147483648
    %v1901 = vxor.u32 %v1899, 2147483648
    %v1902 = vmul.f32 %v1900, 1.442695
    %v1903 = vpow.pop %v1902
    %v1904 = vmul.f32 %v1901, 1.442695
    %v1905 = vpow.pop %v1904
    %v1906 = vadd.f32 %v1903, 1.0
    %v1907 = vadd.f32 %v1905, 1.0
    %v1908 = vrcp.pop %v1906
    %v1909 = vmul.f32 1.0, %v1908
    %v1910 = vrcp.pop %v1907
    %v1911 = vmul.f32 1.0, %v1910
    %v1912 = vtanh.pop %v1899
    %v1913 = vmul.f32 %v1909, %v1708
    %1915 = vrot.lane.b32.xlu0 %v1912, 64
    %v1916 = vpop.permute.xlu0 %1915
    %v1918 = vmul.f32 %v1909, %v1916
    %1920 = vrot.lane.b32.xlu0 %v1918, 64
    %v1921 = vpop.permute.xlu0 %1920
    %v1923 = vadd.f32 %v1913, %v1921
    %v1924 = vtanh.pop %v1923
    %1926 = vrot.lane.b32.xlu0 %v1924, 64
    %v1927 = vpop.permute.xlu0 %1926
    %v1929 = vmul.f32 %v1911, %v1927
    %1931 = vrot.lane.b32.xlu0 %v1820, 64
    %v1932 = vpop.permute.xlu0 %1931
    %v1934 = vsel %vm322, %v1929, %v1932
    %1935 = vmatprep.subr.mxu0 %v319
    %1936 = vmatpush1.msra.mxu0 %v318
    %1937 = vmatprep.subr.mxu0 %v317
    %1938 = vmatpush1.msra.mxu0 %v316
    %1939 = vmatprep.subr.mxu0 %v315
    %1940 = vmatpush1.msra.mxu0 %v314
    %1941 = vmatprep.subr.mxu0 %v313
    %1942 = vmatpush1.msra.mxu0 %v312
    %1943 = vmatprep.subr.mxu0 %v311
    %1944 = vmatpush1.msra.mxu0 %v310
    %1945 = vmatprep.subr.mxu0 %v309
    %1946 = vmatpush1.msra.mxu0 %v308
    %1947 = vmatprep.subr.mxu0 %v307
    %1948 = vmatpush1.msra.mxu0 %v306
    %1949 = vmatprep.subr.mxu0 %v305
    %1950 = vmatpush1.msra.mxu0 %v304
    %1951 = vmatprep.subr.mxu0 %v303
    %1952 = vmatpush1.msra.mxu0 %v302
    %1953 = vmatprep.subr.mxu0 %v301
    %1954 = vmatpush1.msra.mxu0 %v300
    %1955 = vmatprep.subr.mxu0 %v299
    %1956 = vmatpush1.msra.mxu0 %v298
    %1957 = vmatprep.subr.mxu0 %v297
    %1958 = vmatpush1.msra.mxu0 %v296
    %1959 = vmatprep.subr.mxu0 %v295
    %1960 = vmatpush1.msra.mxu0 %v294
    %1961 = vmatprep.subr.mxu0 %v293
    %1962 = vmatpush1.msra.mxu0 %v292
    %1963 = vmatprep.subr.mxu0 %v291
    %1964 = vmatpush1.msra.mxu0 %v290
    %1965 = vmatprep.subr.mxu0 %v289
    %1966 = vmatpush1.msra.mxu0 %v288
    %1967 = vmatprep.subr.mxu0 0.0
    %1968 = vmatpush2.msra.mxu0 0.0
    %1969 = vmatprep.subr.mxu0 0.0
    %1970 = vmatpush2.msra.mxu0 0.0
    %1971 = vmatprep.subr.mxu0 0.0
    %1972 = vmatpush2.msra.mxu0 0.0
    %1973 = vmatprep.subr.mxu0 0.0
    %1974 = vmatpush2.msra.mxu0 0.0
    %1975 = vmatprep.subr.mxu0 0.0
    %1976 = vmatpush2.msra.mxu0 0.0
    %1977 = vmatprep.subr.mxu0 0.0
    %1978 = vmatpush2.msra.mxu0 0.0
    %1979 = vmatprep.subr.mxu0 0.0
    %1980 = vmatpush2.msra.mxu0 0.0
    %1981 = vmatprep.subr.mxu0 0.0
    %1982 = vmatpush2.msra.mxu0 0.0
    %1983 = vmatprep.subr.mxu0 0.0
    %1984 = vmatpush2.msra.mxu0 0.0
    %1985 = vmatprep.subr.mxu0 0.0
    %1986 = vmatpush2.msra.mxu0 0.0
    %1987 = vmatprep.subr.mxu0 0.0
    %1988 = vmatpush2.msra.mxu0 0.0
    %1989 = vmatprep.subr.mxu0 0.0
    %1990 = vmatpush2.msra.mxu0 0.0
    %1991 = vmatprep.subr.mxu0 0.0
    %1992 = vmatpush2.msra.mxu0 0.0
    %1993 = vmatprep.subr.mxu0 0.0
    %1994 = vmatpush2.msra.mxu0 0.0
    %1995 = vmatprep.subr.mxu0 0.0
    %1996 = vmatpush2.msra.mxu0 0.0
    %1997 = vmatprep.subr.mxu0 0.0
    %1998 = vmatpush2.msra.mxu0 0.0
    %1999 = vmatprep.mubr.f32.mxu0 0.0
    %2000 = vmatmul.mubr.f32.gmra.mxu0 %v1934
    %v2001 = vpop.f32.mrf.mxu0
    %v2002 = vadd.f32 %v265, %v2001
    %v2003 = vpop.f32.mrf.mxu0
    %v2004 = vadd.f32 %v269, %v2003
    %2005 = vdwg.mxu0
    %v2006 = vxor.u32 %v2002, 2147483648
    %v2007 = vxor.u32 %v2004, 2147483648
    %v2008 = vmul.f32 %v2006, 1.442695
    %v2009 = vpow.pop %v2008
    %v2010 = vmul.f32 %v2007, 1.442695
    %v2011 = vpow.pop %v2010
    %v2012 = vadd.f32 %v2009, 1.0
    %v2013 = vadd.f32 %v2011, 1.0
    %v2014 = vrcp.pop %v2012
    %v2015 = vmul.f32 1.0, %v2014
    %v2016 = vrcp.pop %v2013
    %v2017 = vmul.f32 1.0, %v2016
    %v2018 = vtanh.pop %v2004
    %v2019 = vmul.f32 %v2015, %v1814
    %2021 = vrot.lane.b32.xlu0 %v2018, 64
    %v2022 = vpop.permute.xlu0 %2021
    %v2024 = vmul.f32 %v2015, %v2022
    %2026 = vrot.lane.b32.xlu0 %v2024, 64
    %v2027 = vpop.permute.xlu0 %2026
    %v2029 = vadd.f32 %v2019, %v2027
    %v2030 = vtanh.pop %v2029
    %2032 = vrot.lane.b32.xlu0 %v2030, 64
    %v2033 = vpop.permute.xlu0 %2032
    %v2035 = vmul.f32 %v2017, %v2033
    %v2036 = vld [vmem:[%s6] sm:$0x1]
    %v2038 = vlaneseq
    %v2039 = vshrl.u32 %v2038, 7
    %v2040 = vsub.s32 0, %v2039
    %v2041 = vrot.slane %v2036, %v2040
    %v2043 = vmul.f32 %v2035, %v2041
    %v2044 = vsel %vm322, %v2043, 0.0
    %2045 = vadd.xlane.f32.xlu0 %v2044
    %v2046 = vpop.xlane.xlu0 %2045
    %v2047 = vld [vmem:[#allocation3] sm:$0x1]
    %v2049 = vlaneseq
    %v2050 = vshrl.u32 %v2049, 7
    %v2051 = vsub.s32 0, %v2050
    %v2052 = vrot.slane %v2047, %v2051
    %v2054 = vadd.f32 %v2046, %v2052
    %vm2055 = vcmask 7168
    %2056 = vst.msk [vmem:[%s8] sm:$0xff] %vm2055, %v2054
    // Predicated region
    $region50: #{tpu_custom_call.1} parent=1 // pred_check
      _
    $region51: #{tpu_custom_call.1} parent=1 // pred_check_branch
      %2058 = sbr.rel (0) target = $region53
    $region52: #{tpu_custom_call.1} parent=1 // pred_region
      _
    $region53: #{tpu_custom_call.1} parent=1 // pred_fallthru
      _
    // Predicated region
    $region54: #{tpu_custom_call.1} parent=1 // pred_check
      _
    $region55: #{tpu_custom_call.1} parent=1 // pred_check_branch
      %2060 = sbr.rel (0) target = $region57
    $region56: #{tpu_custom_call.1} parent=1 // pred_region
      _
    $region57: #{tpu_custom_call.1} parent=1 // pred_fallthru
      _
    %2061 = vsyncpa [#allocation5], 1
    %2062 = vsyncpa [#allocation7], 1
    %2063 = vsyncpa [#allocation10], 1

</llo_original>
